<compile_context>
chip_gen: v7x
topology: tpu7x:2x2x1
jax: 0.10.0
libtpu: 0.0.40
codegen_flags: <defaults>
</compile_context>

<pallas_src>
import functools

import jax
import jax.numpy as jnp
from jax.experimental import pallas as pl
from jax.experimental.pallas import tpu as pltpu


def _mhca_kernel(dst_ref, src_ref, mask_ref,
                 qn_w, qn_b, kn_w, kn_b, vn_w, vn_b,
                 wq, bq, wk, bk, wv, bv, wfc, bfc,
                 out_ref,
                 k_sc, v_sc, attn_sc,
                 *, num_heads, d_k):
    # --- K / V path: compute once per batch element, cache across q-tiles ---
    @pl.when(pl.program_id(1) == 0)
    def _():
        src = src_ref[0].astype(jnp.float32)                     # (Ls, D)
        mu = jnp.mean(src, axis=-1, keepdims=True)
        var = jnp.mean((src - mu) ** 2, axis=-1, keepdims=True)
        src_n = (src - mu) * jax.lax.rsqrt(var + 1e-5)           # shared K/V stats
        k_in = (src_n * kn_w[...] + kn_b[...]).astype(jnp.bfloat16)
        v_in = (src_n * vn_w[...] + vn_b[...]).astype(jnp.bfloat16)
        # weights are pre-transposed (in, out) -> no in-kernel transpose
        k = jnp.dot(k_in, wk[...], preferred_element_type=jnp.float32) + bk[...]
        v = jnp.dot(v_in, wv[...], preferred_element_type=jnp.float32) + bv[...]
        k_sc[...] = k.astype(jnp.bfloat16)
        v_sc[...] = v.astype(jnp.bfloat16)

    # --- Q path (per query tile) ---
    dst = dst_ref[0].astype(jnp.float32)                         # (TQ, D)
    mu = jnp.mean(dst, axis=-1, keepdims=True)
    var = jnp.mean((dst - mu) ** 2, axis=-1, keepdims=True)
    q_in = ((dst - mu) * jax.lax.rsqrt(var + 1e-5)
            * qn_w[...] + qn_b[...]).astype(jnp.bfloat16)
    # wq / bq are pre-scaled by 1/sqrt(d_k) in the wrapper.
    q = (jnp.dot(q_in, wq[...], preferred_element_type=jnp.float32)
         + bq[...]).astype(jnp.bfloat16)                         # (TQ, D)

    mask = mask_ref[0].astype(jnp.float32)                       # (1, Ls), pre-scaled
    k = k_sc[...]                                                # (Ls, D) bf16
    v = v_sc[...]                                                # (Ls, D) bf16

    # --- per-head attention, results written in place into attn_sc ---
    for h in range(num_heads):
        lo = h * d_k
        qh = q[:, lo:lo + d_k]                                   # (TQ, dk)
        kh = k[:, lo:lo + d_k]                                   # (Ls, dk)
        vh = v[:, lo:lo + d_k]                                   # (Ls, dk)
        # contract on dk without materializing a transpose
        s = jax.lax.dot_general(qh, kh, (((1,), (1,)), ((), ())),
                                preferred_element_type=jnp.float32)  # (TQ, Ls)
        s = s + mask                                             # mask already /sqrt(dk)
        s = s - jnp.max(s, axis=-1, keepdims=True)
        p = jnp.exp(s)
        inv_l = pl.reciprocal(jnp.sum(p, axis=-1, keepdims=True), approx=True)
        o_h = jnp.dot(p.astype(jnp.bfloat16), vh,
                      preferred_element_type=jnp.float32)        # (TQ, dk)
        attn_sc[:, lo:lo + d_k] = o_h * inv_l

    # --- output projection + residual ---
    attn = attn_sc[...].astype(jnp.bfloat16)                     # (TQ, D)
    out = jnp.dot(attn, wfc[...], preferred_element_type=jnp.float32) + bfc[...]
    # dropout == identity (eval mode)
    out_ref[0] = (out + dst).astype(out_ref.dtype)


def _pick_q_tile(ld):
    if ld <= 512:
        return ld
    for t in (512, 256, 128, 64, 32, 16, 8):
        if ld % t == 0:
            return t
    return ld


def mhca_forward(src, dst, padding_mask, params, *, num_heads):
    """Pallas implementation of MultiHeadCrossAttention.forward.

    src:          (B, Ls, D)
    dst:          (B, Ld, D)
    padding_mask: (B, Ls) or (B, 1, Ls) additive key-padding mask
                  (0 keep, -1e9 pad).  TODO(synk): per-query (B, Ld, Ls)
                  masks would need the old full-mask BlockSpec.
    returns:      (B, Ld, D)
    """
    B, Ld, D = dst.shape
    Ls = src.shape[1]
    assert D % num_heads == 0
    d_k = D // num_heads

    (qn_w, qn_b, kn_w, kn_b, vn_w, vn_b,
     wq, bq, wk, bk, wv, bv, wfc, bfc) = params

    inv_sqrt_dk = 1.0 / (d_k ** 0.5)

    # Wrapper-side layout / scaling plumbing (free at XLA level):
    wq_t = (wq.T * inv_sqrt_dk).astype(jnp.bfloat16)   # fold 1/sqrt(dk) into Q map
    bq_s = (bq * inv_sqrt_dk).astype(jnp.float32)
    wk_t = wk.T.astype(jnp.bfloat16)
    wv_t = wv.T.astype(jnp.bfloat16)
    wfc_t = wfc.T.astype(jnp.bfloat16)

    if padding_mask.ndim == 2:
        padding_mask = padding_mask[:, None, :]
    mask = (padding_mask * inv_sqrt_dk).astype(jnp.float32)      # (B, 1, Ls)

    tq = _pick_q_tile(Ld)
    grid = (B, Ld // tq)

    dst_spec = pl.BlockSpec((1, tq, D), lambda b, t: (b, t, 0))
    src_spec = pl.BlockSpec((1, Ls, D), lambda b, t: (b, 0, 0))
    mask_spec = pl.BlockSpec((1, 1, Ls), lambda b, t: (b, 0, 0))
    mat_spec = pl.BlockSpec((D, D), lambda b, t: (0, 0))
    vec_spec = pl.BlockSpec((1, D), lambda b, t: (0, 0))

    weight_specs = [
        vec_spec, vec_spec,   # Q_norm gamma/beta
        vec_spec, vec_spec,   # K_norm
        vec_spec, vec_spec,   # V_norm
        mat_spec, vec_spec,   # Q_map (pre-transposed, pre-scaled)
        mat_spec, vec_spec,   # K_map
        mat_spec, vec_spec,   # V_map
        mat_spec, vec_spec,   # fc
    ]

    kernel = functools.partial(_mhca_kernel, num_heads=num_heads, d_k=d_k)

    return pl.pallas_call(
        kernel,
        out_shape=jax.ShapeDtypeStruct((B, Ld, D), dst.dtype),
        grid_spec=pltpu.PrefetchScalarGridSpec(
            num_scalar_prefetch=0,
            grid=grid,
            in_specs=[dst_spec, src_spec, mask_spec] + weight_specs,
            out_specs=dst_spec,
            scratch_shapes=[
                pltpu.VMEM((Ls, D), jnp.bfloat16),   # cached K
                pltpu.VMEM((Ls, D), jnp.bfloat16),   # cached V
                pltpu.VMEM((tq, D), jnp.float32),    # per-tile attention slab
            ]),
        compiler_params=pltpu.CompilerParams(
            # batch axis split across TensorCores (v7x); query axis carries the
            # K/V scratch so it must stay "arbitrary".
            dimension_semantics=("parallel", "arbitrary")),
    )(dst, src, mask,
      qn_w, qn_b, kn_w, kn_b, vn_w, vn_b,
      wq_t, bq_s, wk_t, bk, wv_t, bv, wfc_t, bfc)


def _reference(src, dst, padding_mask, params, *, num_heads):
    """Pure-JAX (f32) replica of the PyTorch forward, for verification."""
    (qn_w, qn_b, kn_w, kn_b, vn_w, vn_b,
     wq, bq, wk, bk, wv, bv, wfc, bfc) = params
    D = dst.shape[-1]
    d_k = D // num_heads

    def ln(x, w, b):
        mu = jnp.mean(x, axis=-1, keepdims=True)
        var = jnp.mean((x - mu) ** 2, axis=-1, keepdims=True)
        return (x - mu) / jnp.sqrt(var + 1e-5) * w + b

    q = ln(dst, qn_w, qn_b) @ wq.T + bq
    k = ln(src, kn_w, kn_b) @ wk.T + bk
    v = ln(src, vn_w, vn_b) @ wv.T + bv

    B, Ld, _ = q.shape
    Ls = k.shape[1]
    qh = q.reshape(B, Ld, num_heads, d_k).transpose(0, 2, 1, 3)   # b h l k
    kh = k.reshape(B, Ls, num_heads, d_k).transpose(0, 2, 3, 1)   # b h k l
    vh = v.reshape(B, Ls, num_heads, d_k).transpose(0, 2, 1, 3)   # b h l k

    if padding_mask.ndim == 2:
        padding_mask = padding_mask[:, None, :]
    s = (jnp.einsum('bhld,bhdm->bhlm', qh, kh)
         + padding_mask[:, None]) / (d_k ** 0.5)
    p = jax.nn.softmax(s, axis=-1)
    o = jnp.einsum('bhlm,bhmd->bhld', p, vh)
    o = o.transpose(0, 2, 1, 3).reshape(B, Ld, D)
    return o @ wfc.T + bfc + dst


if __name__ == "__main__":
    B, Ls, Ld, D, H = 2, 16, 8, 32, 4

    key = jax.random.PRNGKey(0)
    keys = jax.random.split(key, 16)

    src = jax.random.normal(keys[0], (B, Ls, D), jnp.float32)
    dst = jax.random.normal(keys[1], (B, Ld, D), jnp.float32)
    # additive key-padding mask: last 4 src positions of batch 1 are padded out
    pad = jnp.zeros((B, Ls), jnp.float32).at[1, -4:].set(-1e9)
    padding_mask = pad[:, None, :]                               # (B, 1, Ls)

    def lin(kw, kb, fan_in):
        bound = 1.0 / (fan_in ** 0.5)
        w = jax.random.uniform(kw, (D, D), jnp.float32, -bound, bound)
        b = jax.random.uniform(kb, (1, D), jnp.float32, -bound, bound)
        return w, b

    wq, bq = lin(keys[2], keys[3], D)
    wk, bk = lin(keys[4], keys[5], D)
    wv, bv = lin(keys[6], keys[7], D)
    wfc, bfc = lin(keys[8], keys[9], D)

    # LayerNorm params (PyTorch default init: gamma=1, beta=0) -- perturbed
    # slightly so they are exercised, deterministically.
    qn_w = jnp.ones((1, D), jnp.float32) + 0.1 * jax.random.normal(keys[10], (1, D))
    qn_b = 0.1 * jax.random.normal(keys[11], (1, D))
    kn_w = jnp.ones((1, D), jnp.float32) + 0.1 * jax.random.normal(keys[12], (1, D))
    kn_b = 0.1 * jax.random.normal(keys[13], (1, D))
    vn_w = jnp.ones((1, D), jnp.float32) + 0.1 * jax.random.normal(keys[14], (1, D))
    vn_b = 0.1 * jax.random.normal(keys[15], (1, D))

    params = (qn_w, qn_b, kn_w, kn_b, vn_w, vn_b,
              wq, bq, wk, bk, wv, bv, wfc, bfc)

    out = mhca_forward(src, dst, padding_mask, params, num_heads=H)
    out = jax.block_until_ready(out)

    ref = _reference(src, dst, padding_mask, params, num_heads=H)
    assert out.shape == (B, Ld, D)
    # tolerance loosened vs. the f32 version because the MXU operands are bf16
    assert jnp.allclose(out, ref, atol=5e-2, rtol=5e-2), (
        float(jnp.max(jnp.abs(out - ref))))

    print("KERNEL_OK")
</pallas_src>

<mosaic_0001>
module attributes {stable_mosaic.version = 11 : i64} {
  func.func @_mhca_kernel(%arg0: i32, %arg1: i32, %arg2: memref<1x8x32xf32, #tpu.memory_space<vmem>>, %arg3: memref<1x16x32xf32, #tpu.memory_space<vmem>>, %arg4: memref<1x1x16xf32, #tpu.memory_space<vmem>>, %arg5: memref<1x32xf32, #tpu.memory_space<vmem>>, %arg6: memref<1x32xf32, #tpu.memory_space<vmem>>, %arg7: memref<1x32xf32, #tpu.memory_space<vmem>>, %arg8: memref<1x32xf32, #tpu.memory_space<vmem>>, %arg9: memref<1x32xf32, #tpu.memory_space<vmem>>, %arg10: memref<1x32xf32, #tpu.memory_space<vmem>>, %arg11: memref<32x32xbf16, #tpu.memory_space<vmem>>, %arg12: memref<1x32xf32, #tpu.memory_space<vmem>>, %arg13: memref<32x32xbf16, #tpu.memory_space<vmem>>, %arg14: memref<1x32xf32, #tpu.memory_space<vmem>>, %arg15: memref<32x32xbf16, #tpu.memory_space<vmem>>, %arg16: memref<1x32xf32, #tpu.memory_space<vmem>>, %arg17: memref<32x32xbf16, #tpu.memory_space<vmem>>, %arg18: memref<1x32xf32, #tpu.memory_space<vmem>>, %arg19: memref<1x8x32xf32, #tpu.memory_space<vmem>>, %arg20: memref<16x32xbf16, #tpu.memory_space<vmem>>, %arg21: memref<16x32xbf16, #tpu.memory_space<vmem>>, %arg22: memref<8x32xf32, #tpu.memory_space<vmem>>) attributes {dimension_semantics = [#tpu.dimension_semantics<parallel>, #tpu.dimension_semantics<arbitrary>], iteration_bounds = array<i64: 2, 1>, scalar_prefetch = 0 : i64, scratch_operands = 3 : i64, tpu.core_type = #tpu.core_type<tc>, window_params = [{transform_indices = @transform_0, window_bounds = array<i64: 1, 8, 32>}, {transform_indices = @transform_1, window_bounds = array<i64: 1, 16, 32>}, {transform_indices = @transform_2, window_bounds = array<i64: 1, 1, 16>}, {pipeline_mode = #tpu.pipeline_mode<synchronous>, transform_indices = @transform_3, window_bounds = array<i64: 1, 32>}, {pipeline_mode = #tpu.pipeline_mode<synchronous>, transform_indices = @transform_4, window_bounds = array<i64: 1, 32>}, {pipeline_mode = #tpu.pipeline_mode<synchronous>, transform_indices = @transform_5, window_bounds = array<i64: 1, 32>}, {pipeline_mode = #tpu.pipeline_mode<synchronous>, transform_indices = @transform_6, window_bounds = array<i64: 1, 32>}, {pipeline_mode = #tpu.pipeline_mode<synchronous>, transform_indices = @transform_7, window_bounds = array<i64: 1, 32>}, {pipeline_mode = #tpu.pipeline_mode<synchronous>, transform_indices = @transform_8, window_bounds = array<i64: 1, 32>}, {pipeline_mode = #tpu.pipeline_mode<synchronous>, transform_indices = @transform_9, window_bounds = array<i64: 32, 32>}, {pipeline_mode = #tpu.pipeline_mode<synchronous>, transform_indices = @transform_10, window_bounds = array<i64: 1, 32>}, {pipeline_mode = #tpu.pipeline_mode<synchronous>, transform_indices = @transform_11, window_bounds = array<i64: 32, 32>}, {pipeline_mode = #tpu.pipeline_mode<synchronous>, transform_indices = @transform_12, window_bounds = array<i64: 1, 32>}, {pipeline_mode = #tpu.pipeline_mode<synchronous>, transform_indices = @transform_13, window_bounds = array<i64: 32, 32>}, {pipeline_mode = #tpu.pipeline_mode<synchronous>, transform_indices = @transform_14, window_bounds = array<i64: 1, 32>}, {pipeline_mode = #tpu.pipeline_mode<synchronous>, transform_indices = @transform_15, window_bounds = array<i64: 32, 32>}, {pipeline_mode = #tpu.pipeline_mode<synchronous>, transform_indices = @transform_16, window_bounds = array<i64: 1, 32>}, {transform_indices = @transform_17, window_bounds = array<i64: 1, 8, 32>}]} {
    %c0_i32 = arith.constant 0 : i32
    %0 = arith.cmpi eq, %arg1, %c0_i32 : i32
    %1 = arith.extui %0 : i1 to i32
    %c0_i32_0 = arith.constant 0 : i32
    %2 = arith.cmpi ne, %1, %c0_i32_0 : i32
    scf.if %2 {
      %c0_54 = arith.constant 0 : index
      %c0_55 = arith.constant 0 : index
      %c0_56 = arith.constant 0 : index
      %127 = vector.load %arg3[%c0_54, %c0_55, %c0_56] : memref<1x16x32xf32, #tpu.memory_space<vmem>>, vector<1x16x32xf32>
      %128 = vector.shape_cast %127 : vector<1x16x32xf32> to vector<16x32xf32>
      %cst_57 = arith.constant dense<0.000000e+00> : vector<16xf32>
      %129 = vector.multi_reduction <add>, %128, %cst_57 [1] : vector<16x32xf32> to vector<16xf32>
      %130 = vector.shape_cast %129 : vector<16xf32> to vector<16x1xf32>
      %cst_58 = arith.constant 3.200000e+01 : f32
      %131 = vector.broadcast %cst_58 : f32 to vector<16x1xf32>
      %132 = arith.divf %130, %131 : vector<16x1xf32>
      %133 = vector.broadcast %132 : vector<16x1xf32> to vector<16x32xf32>
      %134 = arith.subf %128, %133 : vector<16x32xf32>
      %135 = arith.mulf %134, %134 : vector<16x32xf32>
      %cst_59 = arith.constant dense<0.000000e+00> : vector<16xf32>
      %136 = vector.multi_reduction <add>, %135, %cst_59 [1] : vector<16x32xf32> to vector<16xf32>
      %137 = vector.shape_cast %136 : vector<16xf32> to vector<16x1xf32>
      %cst_60 = arith.constant 3.200000e+01 : f32
      %138 = vector.broadcast %cst_60 : f32 to vector<16x1xf32>
      %139 = arith.divf %137, %138 : vector<16x1xf32>
      %140 = vector.broadcast %132 : vector<16x1xf32> to vector<16x32xf32>
      %141 = arith.subf %128, %140 : vector<16x32xf32>
      %cst_61 = arith.constant 9.99999974E-6 : f32
      %142 = vector.broadcast %cst_61 : f32 to vector<16x1xf32>
      %143 = arith.addf %139, %142 : vector<16x1xf32>
      %144 = math.rsqrt %143 : vector<16x1xf32>
      %145 = vector.broadcast %144 : vector<16x1xf32> to vector<16x32xf32>
      %146 = arith.mulf %141, %145 : vector<16x32xf32>
      %c0_62 = arith.constant 0 : index
      %c0_63 = arith.constant 0 : index
      %147 = vector.load %arg7[%c0_62, %c0_63] : memref<1x32xf32, #tpu.memory_space<vmem>>, vector<1x32xf32>
      %148 = vector.broadcast %147 : vector<1x32xf32> to vector<16x32xf32>
      %149 = arith.mulf %146, %148 : vector<16x32xf32>
      %c0_64 = arith.constant 0 : index
      %c0_65 = arith.constant 0 : index
      %150 = vector.load %arg8[%c0_64, %c0_65] : memref<1x32xf32, #tpu.memory_space<vmem>>, vector<1x32xf32>
      %151 = vector.broadcast %150 : vector<1x32xf32> to vector<16x32xf32>
      %152 = arith.addf %149, %151 : vector<16x32xf32>
      %153 = arith.truncf %152 : vector<16x32xf32> to vector<16x32xbf16>
      %c0_66 = arith.constant 0 : index
      %c0_67 = arith.constant 0 : index
      %154 = vector.load %arg9[%c0_66, %c0_67] : memref<1x32xf32, #tpu.memory_space<vmem>>, vector<1x32xf32>
      %155 = vector.broadcast %154 : vector<1x32xf32> to vector<16x32xf32>
      %156 = arith.mulf %146, %155 : vector<16x32xf32>
      %c0_68 = arith.constant 0 : index
      %c0_69 = arith.constant 0 : index
      %157 = vector.load %arg10[%c0_68, %c0_69] : memref<1x32xf32, #tpu.memory_space<vmem>>, vector<1x32xf32>
      %158 = vector.broadcast %157 : vector<1x32xf32> to vector<16x32xf32>
      %159 = arith.addf %156, %158 : vector<16x32xf32>
      %160 = arith.truncf %159 : vector<16x32xf32> to vector<16x32xbf16>
      %c0_70 = arith.constant 0 : index
      %c0_71 = arith.constant 0 : index
      %161 = vector.load %arg13[%c0_70, %c0_71] : memref<32x32xbf16, #tpu.memory_space<vmem>>, vector<32x32xbf16>
      %cst_72 = arith.constant dense<0.000000e+00> : vector<16x32xf32>
      %162 = tpu.matmul %153, %161, %cst_72 {dimension_numbers = #tpu.dot_dimension_numbers<[1], [0], [0], [1], [0, 0, 1, 1], [], []>} : vector<16x32xbf16>, vector<32x32xbf16>, vector<16x32xf32> -> vector<16x32xf32>
      %c0_73 = arith.constant 0 : index
      %c0_74 = arith.constant 0 : index
      %163 = vector.load %arg14[%c0_73, %c0_74] : memref<1x32xf32, #tpu.memory_space<vmem>>, vector<1x32xf32>
      %164 = vector.broadcast %163 : vector<1x32xf32> to vector<16x32xf32>
      %165 = arith.addf %162, %164 : vector<16x32xf32>
      %c0_75 = arith.constant 0 : index
      %c0_76 = arith.constant 0 : index
      %166 = vector.load %arg15[%c0_75, %c0_76] : memref<32x32xbf16, #tpu.memory_space<vmem>>, vector<32x32xbf16>
      %cst_77 = arith.constant dense<0.000000e+00> : vector<16x32xf32>
      %167 = tpu.matmul %160, %166, %cst_77 {dimension_numbers = #tpu.dot_dimension_numbers<[1], [0], [0], [1], [0, 0, 1, 1], [], []>} : vector<16x32xbf16>, vector<32x32xbf16>, vector<16x32xf32> -> vector<16x32xf32>
      %c0_78 = arith.constant 0 : index
      %c0_79 = arith.constant 0 : index
      %168 = vector.load %arg16[%c0_78, %c0_79] : memref<1x32xf32, #tpu.memory_space<vmem>>, vector<1x32xf32>
      %169 = vector.broadcast %168 : vector<1x32xf32> to vector<16x32xf32>
      %170 = arith.addf %167, %169 : vector<16x32xf32>
      %171 = arith.truncf %165 : vector<16x32xf32> to vector<16x32xbf16>
      %c0_80 = arith.constant 0 : index
      %c0_81 = arith.constant 0 : index
      %172 = vector.load %arg20[%c0_80, %c0_81] : memref<16x32xbf16, #tpu.memory_space<vmem>>, vector<16x32xbf16>
      tpu.vector_store %arg20[%c0_80, %c0_81], %171 {strides = array<i32>} : memref<16x32xbf16, #tpu.memory_space<vmem>>, vector<16x32xbf16>,
      %173 = arith.truncf %170 : vector<16x32xf32> to vector<16x32xbf16>
      %c0_82 = arith.constant 0 : index
      %c0_83 = arith.constant 0 : index
      %174 = vector.load %arg21[%c0_82, %c0_83] : memref<16x32xbf16, #tpu.memory_space<vmem>>, vector<16x32xbf16>
      tpu.vector_store %arg21[%c0_82, %c0_83], %173 {strides = array<i32>} : memref<16x32xbf16, #tpu.memory_space<vmem>>, vector<16x32xbf16>,
    } else {
    }
    %c0 = arith.constant 0 : index
    %c0_1 = arith.constant 0 : index
    %c0_2 = arith.constant 0 : index
    %3 = vector.load %arg2[%c0, %c0_1, %c0_2] : memref<1x8x32xf32, #tpu.memory_space<vmem>>, vector<1x8x32xf32>
    %4 = vector.shape_cast %3 : vector<1x8x32xf32> to vector<8x32xf32>
    %cst = arith.constant dense<0.000000e+00> : vector<8xf32>
    %5 = vector.multi_reduction <add>, %4, %cst [1] : vector<8x32xf32> to vector<8xf32>
    %6 = vector.shape_cast %5 : vector<8xf32> to vector<8x1xf32>
    %cst_3 = arith.constant 3.200000e+01 : f32
    %7 = vector.broadcast %cst_3 : f32 to vector<8x1xf32>
    %8 = arith.divf %6, %7 : vector<8x1xf32>
    %9 = vector.broadcast %8 : vector<8x1xf32> to vector<8x32xf32>
    %10 = arith.subf %4, %9 : vector<8x32xf32>
    %11 = arith.mulf %10, %10 : vector<8x32xf32>
    %cst_4 = arith.constant dense<0.000000e+00> : vector<8xf32>
    %12 = vector.multi_reduction <add>, %11, %cst_4 [1] : vector<8x32xf32> to vector<8xf32>
    %13 = vector.shape_cast %12 : vector<8xf32> to vector<8x1xf32>
    %cst_5 = arith.constant 3.200000e+01 : f32
    %14 = vector.broadcast %cst_5 : f32 to vector<8x1xf32>
    %15 = arith.divf %13, %14 : vector<8x1xf32>
    %16 = vector.broadcast %8 : vector<8x1xf32> to vector<8x32xf32>
    %17 = arith.subf %4, %16 : vector<8x32xf32>
    %cst_6 = arith.constant 9.99999974E-6 : f32
    %18 = vector.broadcast %cst_6 : f32 to vector<8x1xf32>
    %19 = arith.addf %15, %18 : vector<8x1xf32>
    %20 = math.rsqrt %19 : vector<8x1xf32>
    %21 = vector.broadcast %20 : vector<8x1xf32> to vector<8x32xf32>
    %22 = arith.mulf %17, %21 : vector<8x32xf32>
    %c0_7 = arith.constant 0 : index
    %c0_8 = arith.constant 0 : index
    %23 = vector.load %arg5[%c0_7, %c0_8] : memref<1x32xf32, #tpu.memory_space<vmem>>, vector<1x32xf32>
    %24 = vector.broadcast %23 : vector<1x32xf32> to vector<8x32xf32>
    %25 = arith.mulf %22, %24 : vector<8x32xf32>
    %c0_9 = arith.constant 0 : index
    %c0_10 = arith.constant 0 : index
    %26 = vector.load %arg6[%c0_9, %c0_10] : memref<1x32xf32, #tpu.memory_space<vmem>>, vector<1x32xf32>
    %27 = vector.broadcast %26 : vector<1x32xf32> to vector<8x32xf32>
    %28 = arith.addf %25, %27 : vector<8x32xf32>
    %29 = arith.truncf %28 : vector<8x32xf32> to vector<8x32xbf16>
    %c0_11 = arith.constant 0 : index
    %c0_12 = arith.constant 0 : index
    %30 = vector.load %arg11[%c0_11, %c0_12] : memref<32x32xbf16, #tpu.memory_space<vmem>>, vector<32x32xbf16>
    %cst_13 = arith.constant dense<0.000000e+00> : vector<8x32xf32>
    %31 = tpu.matmul %29, %30, %cst_13 {dimension_numbers = #tpu.dot_dimension_numbers<[1], [0], [0], [1], [0, 0, 1, 1], [], []>} : vector<8x32xbf16>, vector<32x32xbf16>, vector<8x32xf32> -> vector<8x32xf32>
    %c0_14 = arith.constant 0 : index
    %c0_15 = arith.constant 0 : index
    %32 = vector.load %arg12[%c0_14, %c0_15] : memref<1x32xf32, #tpu.memory_space<vmem>>, vector<1x32xf32>
    %33 = vector.broadcast %32 : vector<1x32xf32> to vector<8x32xf32>
    %34 = arith.addf %31, %33 : vector<8x32xf32>
    %35 = arith.truncf %34 : vector<8x32xf32> to vector<8x32xbf16>
    %c0_16 = arith.constant 0 : index
    %c0_17 = arith.constant 0 : index
    %c0_18 = arith.constant 0 : index
    %36 = vector.load %arg4[%c0_16, %c0_17, %c0_18] : memref<1x1x16xf32, #tpu.memory_space<vmem>>, vector<1x1x16xf32>
    %37 = vector.shape_cast %36 : vector<1x1x16xf32> to vector<1x16xf32>
    %c0_19 = arith.constant 0 : index
    %c0_20 = arith.constant 0 : index
    %38 = vector.load %arg20[%c0_19, %c0_20] : memref<16x32xbf16, #tpu.memory_space<vmem>>, vector<16x32xbf16>
    %c0_21 = arith.constant 0 : index
    %c0_22 = arith.constant 0 : index
    %39 = vector.load %arg21[%c0_21, %c0_22] : memref<16x32xbf16, #tpu.memory_space<vmem>>, vector<16x32xbf16>
    %40 = vector.extract_strided_slice %35 {offsets = [0, 0], sizes = [8, 8], strides = [1, 1]} : vector<8x32xbf16> to vector<8x8xbf16>
    %41 = vector.extract_strided_slice %38 {offsets = [0, 0], sizes = [16, 8], strides = [1, 1]} : vector<16x32xbf16> to vector<16x8xbf16>
    %42 = vector.extract_strided_slice %39 {offsets = [0, 0], sizes = [16, 8], strides = [1, 1]} : vector<16x32xbf16> to vector<16x8xbf16>
    %cst_23 = arith.constant dense<0.000000e+00> : vector<8x16xf32>
    %43 = tpu.matmul %40, %41, %cst_23 {dimension_numbers = #tpu.dot_dimension_numbers<[1], [1], [0], [0], [0, 0, 1, 0], [], []>} : vector<8x8xbf16>, vector<16x8xbf16>, vector<8x16xf32> -> vector<8x16xf32>
    %44 = vector.broadcast %37 : vector<1x16xf32> to vector<8x16xf32>
    %45 = arith.addf %43, %44 : vector<8x16xf32>
    %cst_24 = arith.constant dense<0xFF800000> : vector<8xf32>
    %46 = vector.multi_reduction <maximumf>, %45, %cst_24 [1] : vector<8x16xf32> to vector<8xf32>
    %47 = vector.shape_cast %46 : vector<8xf32> to vector<8x1xf32>
    %48 = vector.broadcast %47 : vector<8x1xf32> to vector<8x16xf32>
    %49 = arith.subf %45, %48 : vector<8x16xf32>
    %50 = math.exp %49 : vector<8x16xf32>
    %cst_25 = arith.constant dense<0.000000e+00> : vector<8xf32>
    %51 = vector.multi_reduction <add>, %50, %cst_25 [1] : vector<8x16xf32> to vector<8xf32>
    %52 = vector.shape_cast %51 : vector<8xf32> to vector<8x1xf32>
    %53 = tpu.reciprocal %52 {approx = true} : vector<8x1xf32> -> vector<8x1xf32>
    %54 = arith.truncf %50 : vector<8x16xf32> to vector<8x16xbf16>
    %cst_26 = arith.constant dense<0.000000e+00> : vector<8x8xf32>
    %55 = tpu.matmul %54, %42, %cst_26 {dimension_numbers = #tpu.dot_dimension_numbers<[1], [0], [0], [1], [0, 0, 1, 1], [], []>} : vector<8x16xbf16>, vector<16x8xbf16>, vector<8x8xf32> -> vector<8x8xf32>
    %56 = vector.broadcast %53 : vector<8x1xf32> to vector<8x8xf32>
    %57 = arith.mulf %55, %56 : vector<8x8xf32>
    %c0_27 = arith.constant 0 : index
    %c0_28 = arith.constant 0 : index
    %58 = vector.load %arg22[%c0_27, %c0_28] : memref<8x32xf32, #tpu.memory_space<vmem>>, vector<8x8xf32>
    tpu.vector_store %arg22[%c0_27, %c0_28], %57 {strides = array<i32>} : memref<8x32xf32, #tpu.memory_space<vmem>>, vector<8x8xf32>,
    %59 = vector.extract_strided_slice %35 {offsets = [0, 8], sizes = [8, 8], strides = [1, 1]} : vector<8x32xbf16> to vector<8x8xbf16>
    %60 = vector.extract_strided_slice %38 {offsets = [0, 8], sizes = [16, 8], strides = [1, 1]} : vector<16x32xbf16> to vector<16x8xbf16>
    %61 = vector.extract_strided_slice %39 {offsets = [0, 8], sizes = [16, 8], strides = [1, 1]} : vector<16x32xbf16> to vector<16x8xbf16>
    %cst_29 = arith.constant dense<0.000000e+00> : vector<8x16xf32>
    %62 = tpu.matmul %59, %60, %cst_29 {dimension_numbers = #tpu.dot_dimension_numbers<[1], [1], [0], [0], [0, 0, 1, 0], [], []>} : vector<8x8xbf16>, vector<16x8xbf16>, vector<8x16xf32> -> vector<8x16xf32>
    %63 = vector.broadcast %37 : vector<1x16xf32> to vector<8x16xf32>
    %64 = arith.addf %62, %63 : vector<8x16xf32>
    %cst_30 = arith.constant dense<0xFF800000> : vector<8xf32>
    %65 = vector.multi_reduction <maximumf>, %64, %cst_30 [1] : vector<8x16xf32> to vector<8xf32>
    %66 = vector.shape_cast %65 : vector<8xf32> to vector<8x1xf32>
    %67 = vector.broadcast %66 : vector<8x1xf32> to vector<8x16xf32>
    %68 = arith.subf %64, %67 : vector<8x16xf32>
    %69 = math.exp %68 : vector<8x16xf32>
    %cst_31 = arith.constant dense<0.000000e+00> : vector<8xf32>
    %70 = vector.multi_reduction <add>, %69, %cst_31 [1] : vector<8x16xf32> to vector<8xf32>
    %71 = vector.shape_cast %70 : vector<8xf32> to vector<8x1xf32>
    %72 = tpu.reciprocal %71 {approx = true} : vector<8x1xf32> -> vector<8x1xf32>
    %73 = arith.truncf %69 : vector<8x16xf32> to vector<8x16xbf16>
    %cst_32 = arith.constant dense<0.000000e+00> : vector<8x8xf32>
    %74 = tpu.matmul %73, %61, %cst_32 {dimension_numbers = #tpu.dot_dimension_numbers<[1], [0], [0], [1], [0, 0, 1, 1], [], []>} : vector<8x16xbf16>, vector<16x8xbf16>, vector<8x8xf32> -> vector<8x8xf32>
    %75 = vector.broadcast %72 : vector<8x1xf32> to vector<8x8xf32>
    %76 = arith.mulf %74, %75 : vector<8x8xf32>
    %c0_33 = arith.constant 0 : index
    %c8 = arith.constant 8 : index
    %77 = vector.load %arg22[%c0_33, %c8] : memref<8x32xf32, #tpu.memory_space<vmem>>, vector<8x8xf32>
    tpu.vector_store %arg22[%c0_33, %c8], %76 {strides = array<i32>} : memref<8x32xf32, #tpu.memory_space<vmem>>, vector<8x8xf32>,
    %78 = vector.extract_strided_slice %35 {offsets = [0, 16], sizes = [8, 8], strides = [1, 1]} : vector<8x32xbf16> to vector<8x8xbf16>
    %79 = vector.extract_strided_slice %38 {offsets = [0, 16], sizes = [16, 8], strides = [1, 1]} : vector<16x32xbf16> to vector<16x8xbf16>
    %80 = vector.extract_strided_slice %39 {offsets = [0, 16], sizes = [16, 8], strides = [1, 1]} : vector<16x32xbf16> to vector<16x8xbf16>
    %cst_34 = arith.constant dense<0.000000e+00> : vector<8x16xf32>
    %81 = tpu.matmul %78, %79, %cst_34 {dimension_numbers = #tpu.dot_dimension_numbers<[1], [1], [0], [0], [0, 0, 1, 0], [], []>} : vector<8x8xbf16>, vector<16x8xbf16>, vector<8x16xf32> -> vector<8x16xf32>
    %82 = vector.broadcast %37 : vector<1x16xf32> to vector<8x16xf32>
    %83 = arith.addf %81, %82 : vector<8x16xf32>
    %cst_35 = arith.constant dense<0xFF800000> : vector<8xf32>
    %84 = vector.multi_reduction <maximumf>, %83, %cst_35 [1] : vector<8x16xf32> to vector<8xf32>
    %85 = vector.shape_cast %84 : vector<8xf32> to vector<8x1xf32>
    %86 = vector.broadcast %85 : vector<8x1xf32> to vector<8x16xf32>
    %87 = arith.subf %83, %86 : vector<8x16xf32>
    %88 = math.exp %87 : vector<8x16xf32>
    %cst_36 = arith.constant dense<0.000000e+00> : vector<8xf32>
    %89 = vector.multi_reduction <add>, %88, %cst_36 [1] : vector<8x16xf32> to vector<8xf32>
    %90 = vector.shape_cast %89 : vector<8xf32> to vector<8x1xf32>
    %91 = tpu.reciprocal %90 {approx = true} : vector<8x1xf32> -> vector<8x1xf32>
    %92 = arith.truncf %88 : vector<8x16xf32> to vector<8x16xbf16>
    %cst_37 = arith.constant dense<0.000000e+00> : vector<8x8xf32>
    %93 = tpu.matmul %92, %80, %cst_37 {dimension_numbers = #tpu.dot_dimension_numbers<[1], [0], [0], [1], [0, 0, 1, 1], [], []>} : vector<8x16xbf16>, vector<16x8xbf16>, vector<8x8xf32> -> vector<8x8xf32>
    %94 = vector.broadcast %91 : vector<8x1xf32> to vector<8x8xf32>
    %95 = arith.mulf %93, %94 : vector<8x8xf32>
    %c0_38 = arith.constant 0 : index
    %c16 = arith.constant 16 : index
    %96 = vector.load %arg22[%c0_38, %c16] : memref<8x32xf32, #tpu.memory_space<vmem>>, vector<8x8xf32>
    tpu.vector_store %arg22[%c0_38, %c16], %95 {strides = array<i32>} : memref<8x32xf32, #tpu.memory_space<vmem>>, vector<8x8xf32>,
    %97 = vector.extract_strided_slice %35 {offsets = [0, 24], sizes = [8, 8], strides = [1, 1]} : vector<8x32xbf16> to vector<8x8xbf16>
    %98 = vector.extract_strided_slice %38 {offsets = [0, 24], sizes = [16, 8], strides = [1, 1]} : vector<16x32xbf16> to vector<16x8xbf16>
    %99 = vector.extract_strided_slice %39 {offsets = [0, 24], sizes = [16, 8], strides = [1, 1]} : vector<16x32xbf16> to vector<16x8xbf16>
    %cst_39 = arith.constant dense<0.000000e+00> : vector<8x16xf32>
    %100 = tpu.matmul %97, %98, %cst_39 {dimension_numbers = #tpu.dot_dimension_numbers<[1], [1], [0], [0], [0, 0, 1, 0], [], []>} : vector<8x8xbf16>, vector<16x8xbf16>, vector<8x16xf32> -> vector<8x16xf32>
    %101 = vector.broadcast %37 : vector<1x16xf32> to vector<8x16xf32>
    %102 = arith.addf %100, %101 : vector<8x16xf32>
    %cst_40 = arith.constant dense<0xFF800000> : vector<8xf32>
    %103 = vector.multi_reduction <maximumf>, %102, %cst_40 [1] : vector<8x16xf32> to vector<8xf32>
    %104 = vector.shape_cast %103 : vector<8xf32> to vector<8x1xf32>
    %105 = vector.broadcast %104 : vector<8x1xf32> to vector<8x16xf32>
    %106 = arith.subf %102, %105 : vector<8x16xf32>
    %107 = math.exp %106 : vector<8x16xf32>
    %cst_41 = arith.constant dense<0.000000e+00> : vector<8xf32>
    %108 = vector.multi_reduction <add>, %107, %cst_41 [1] : vector<8x16xf32> to vector<8xf32>
    %109 = vector.shape_cast %108 : vector<8xf32> to vector<8x1xf32>
    %110 = tpu.reciprocal %109 {approx = true} : vector<8x1xf32> -> vector<8x1xf32>
    %111 = arith.truncf %107 : vector<8x16xf32> to vector<8x16xbf16>
    %cst_42 = arith.constant dense<0.000000e+00> : vector<8x8xf32>
    %112 = tpu.matmul %111, %99, %cst_42 {dimension_numbers = #tpu.dot_dimension_numbers<[1], [0], [0], [1], [0, 0, 1, 1], [], []>} : vector<8x16xbf16>, vector<16x8xbf16>, vector<8x8xf32> -> vector<8x8xf32>
    %113 = vector.broadcast %110 : vector<8x1xf32> to vector<8x8xf32>
    %114 = arith.mulf %112, %113 : vector<8x8xf32>
    %c0_43 = arith.constant 0 : index
    %c24 = arith.constant 24 : index
    %115 = vector.load %arg22[%c0_43, %c24] : memref<8x32xf32, #tpu.memory_space<vmem>>, vector<8x8xf32>
    tpu.vector_store %arg22[%c0_43, %c24], %114 {strides = array<i32>} : memref<8x32xf32, #tpu.memory_space<vmem>>, vector<8x8xf32>,
    %c0_44 = arith.constant 0 : index
    %c0_45 = arith.constant 0 : index
    %116 = vector.load %arg22[%c0_44, %c0_45] : memref<8x32xf32, #tpu.memory_space<vmem>>, vector<8x32xf32>
    %117 = arith.truncf %116 : vector<8x32xf32> to vector<8x32xbf16>
    %c0_46 = arith.constant 0 : index
    %c0_47 = arith.constant 0 : index
    %118 = vector.load %arg17[%c0_46, %c0_47] : memref<32x32xbf16, #tpu.memory_space<vmem>>, vector<32x32xbf16>
    %cst_48 = arith.constant dense<0.000000e+00> : vector<8x32xf32>
    %119 = tpu.matmul %117, %118, %cst_48 {dimension_numbers = #tpu.dot_dimension_numbers<[1], [0], [0], [1], [0, 0, 1, 1], [], []>} : vector<8x32xbf16>, vector<32x32xbf16>, vector<8x32xf32> -> vector<8x32xf32>
    %c0_49 = arith.constant 0 : index
    %c0_50 = arith.constant 0 : index
    %120 = vector.load %arg18[%c0_49, %c0_50] : memref<1x32xf32, #tpu.memory_space<vmem>>, vector<1x32xf32>
    %121 = vector.broadcast %120 : vector<1x32xf32> to vector<8x32xf32>
    %122 = arith.addf %119, %121 : vector<8x32xf32>
    %123 = arith.addf %122, %4 : vector<8x32xf32>
    %c0_51 = arith.constant 0 : index
    %c0_52 = arith.constant 0 : index
    %c0_53 = arith.constant 0 : index
    %124 = vector.load %arg19[%c0_51, %c0_52, %c0_53] : memref<1x8x32xf32, #tpu.memory_space<vmem>>, vector<1x8x32xf32>
    %125 = vector.shape_cast %124 : vector<1x8x32xf32> to vector<8x32xf32>
    %126 = vector.shape_cast %123 : vector<8x32xf32> to vector<1x8x32xf32>
    tpu.vector_store %arg19[%c0_51, %c0_52, %c0_53], %126 {strides = array<i32>} : memref<1x8x32xf32, #tpu.memory_space<vmem>>, vector<1x8x32xf32>,
    return
  }
  func.func @transform_0(%arg0: i32, %arg1: i32) -> (i32, i32, i32) {
    %c0_i32 = arith.constant 0 : i32
    %c0_i32_0 = arith.constant 0 : i32
    return %arg0, %arg1, %c0_i32 : i32, i32, i32
  }
  func.func @transform_1(%arg0: i32, %arg1: i32) -> (i32, i32, i32) {
    %c0_i32 = arith.constant 0 : i32
    %c0_i32_0 = arith.constant 0 : i32
    %c0_i32_1 = arith.constant 0 : i32
    return %arg0, %c0_i32, %c0_i32_0 : i32, i32, i32
  }
  func.func @transform_2(%arg0: i32, %arg1: i32) -> (i32, i32, i32) {
    %c0_i32 = arith.constant 0 : i32
    %c0_i32_0 = arith.constant 0 : i32
    %c0_i32_1 = arith.constant 0 : i32
    return %arg0, %c0_i32, %c0_i32_0 : i32, i32, i32
  }
  func.func @transform_3(%arg0: i32, %arg1: i32) -> (i32, i32) {
    %c0_i32 = arith.constant 0 : i32
    %c0_i32_0 = arith.constant 0 : i32
    %c0_i32_1 = arith.constant 0 : i32
    return %c0_i32, %c0_i32_0 : i32, i32
  }
  func.func @transform_4(%arg0: i32, %arg1: i32) -> (i32, i32) {
    %c0_i32 = arith.constant 0 : i32
    %c0_i32_0 = arith.constant 0 : i32
    %c0_i32_1 = arith.constant 0 : i32
    return %c0_i32, %c0_i32_0 : i32, i32
  }
  func.func @transform_5(%arg0: i32, %arg1: i32) -> (i32, i32) {
    %c0_i32 = arith.constant 0 : i32
    %c0_i32_0 = arith.constant 0 : i32
    %c0_i32_1 = arith.constant 0 : i32
    return %c0_i32, %c0_i32_0 : i32, i32
  }
  func.func @transform_6(%arg0: i32, %arg1: i32) -> (i32, i32) {
    %c0_i32 = arith.constant 0 : i32
    %c0_i32_0 = arith.constant 0 : i32
    %c0_i32_1 = arith.constant 0 : i32
    return %c0_i32, %c0_i32_0 : i32, i32
  }
  func.func @transform_7(%arg0: i32, %arg1: i32) -> (i32, i32) {
    %c0_i32 = arith.constant 0 : i32
    %c0_i32_0 = arith.constant 0 : i32
    %c0_i32_1 = arith.constant 0 : i32
    return %c0_i32, %c0_i32_0 : i32, i32
  }
  func.func @transform_8(%arg0: i32, %arg1: i32) -> (i32, i32) {
    %c0_i32 = arith.constant 0 : i32
    %c0_i32_0 = arith.constant 0 : i32
    %c0_i32_1 = arith.constant 0 : i32
    return %c0_i32, %c0_i32_0 : i32, i32
  }
  func.func @transform_9(%arg0: i32, %arg1: i32) -> (i32, i32) {
    %c0_i32 = arith.constant 0 : i32
    %c0_i32_0 = arith.constant 0 : i32
    %c0_i32_1 = arith.constant 0 : i32
    return %c0_i32, %c0_i32_0 : i32, i32
  }
  func.func @transform_10(%arg0: i32, %arg1: i32) -> (i32, i32) {
    %c0_i32 = arith.constant 0 : i32
    %c0_i32_0 = arith.constant 0 : i32
    %c0_i32_1 = arith.constant 0 : i32
    return %c0_i32, %c0_i32_0 : i32, i32
  }
  func.func @transform_11(%arg0: i32, %arg1: i32) -> (i32, i32) {
    %c0_i32 = arith.constant 0 : i32
    %c0_i32_0 = arith.constant 0 : i32
    %c0_i32_1 = arith.constant 0 : i32
    return %c0_i32, %c0_i32_0 : i32, i32
  }
  func.func @transform_12(%arg0: i32, %arg1: i32) -> (i32, i32) {
    %c0_i32 = arith.constant 0 : i32
    %c0_i32_0 = arith.constant 0 : i32
    %c0_i32_1 = arith.constant 0 : i32
    return %c0_i32, %c0_i32_0 : i32, i32
  }
  func.func @transform_13(%arg0: i32, %arg1: i32) -> (i32, i32) {
    %c0_i32 = arith.constant 0 : i32
    %c0_i32_0 = arith.constant 0 : i32
    %c0_i32_1 = arith.constant 0 : i32
    return %c0_i32, %c0_i32_0 : i32, i32
  }
  func.func @transform_14(%arg0: i32, %arg1: i32) -> (i32, i32) {
    %c0_i32 = arith.constant 0 : i32
    %c0_i32_0 = arith.constant 0 : i32
    %c0_i32_1 = arith.constant 0 : i32
    return %c0_i32, %c0_i32_0 : i32, i32
  }
  func.func @transform_15(%arg0: i32, %arg1: i32) -> (i32, i32) {
    %c0_i32 = arith.constant 0 : i32
    %c0_i32_0 = arith.constant 0 : i32
    %c0_i32_1 = arith.constant 0 : i32
    return %c0_i32, %c0_i32_0 : i32, i32
  }
  func.func @transform_16(%arg0: i32, %arg1: i32) -> (i32, i32) {
    %c0_i32 = arith.constant 0 : i32
    %c0_i32_0 = arith.constant 0 : i32
    %c0_i32_1 = arith.constant 0 : i32
    return %c0_i32, %c0_i32_0 : i32, i32
  }
  func.func @transform_17(%arg0: i32, %arg1: i32) -> (i32, i32, i32) {
    %c0_i32 = arith.constant 0 : i32
    %c0_i32_0 = arith.constant 0 : i32
    return %arg0, %arg1, %c0_i32 : i32, i32, i32
  }
}

</mosaic_0001>

<llo_original>
// kernel: tpu_custom_call.1
$region0: #{tpu_custom_call.1}
  #allocation0 [shape = 'u32[]', space=smem, size = 0x4, offset = 0x4, fixed_abs, tag = 'smem constant byte address 0x4 - core index']
  #allocation1 [shape = 'u32[144,128]{1,0:T(1,128)}', space=vmem, size = 0x12000, scoped, tag = 'internal scratch']
  #allocation2 [shape = 'bf16[16,32]{1,0:T(16,128)(2,1)}', space=vmem, size = 0x1000, scoped, tag = 'scratch operand']
  #allocation3 [shape = 'bf16[16,32]{1,0:T(16,128)(2,1)}', space=vmem, size = 0x1000, scoped, tag = 'scratch operand']
  #allocation4 [shape = 'f32[8,32]{1,0:T(8,128)}', space=vmem, size = 0x1000, scoped, tag = 'scratch operand']
  %s0 = inlined_call_operand.hbm [shape: f32[2,8,32], index: 0, kind: input, shape index: {}]
  %s1 = inlined_call_operand.hbm [shape: f32[2,16,32], index: 1, kind: input, shape index: {}]
  %s2 = inlined_call_operand.hbm [shape: f32[2,1,16], index: 2, kind: input, shape index: {}]
  %s3 = inlined_call_operand.vmem [shape: f32[1,32], index: 3, kind: input, shape index: {}]
  %s4 = inlined_call_operand.hbm [shape: f32[1,32], index: 4, kind: input, shape index: {}]
  %s5 = inlined_call_operand.hbm [shape: f32[1,32], index: 5, kind: input, shape index: {}]
  %s6 = inlined_call_operand.hbm [shape: f32[1,32], index: 6, kind: input, shape index: {}]
  %s7 = inlined_call_operand.hbm [shape: f32[1,32], index: 7, kind: input, shape index: {}]
  %s8 = inlined_call_operand.hbm [shape: f32[1,32], index: 8, kind: input, shape index: {}]
  %s9 = inlined_call_operand.vmem [shape: bf16[32,32], index: 9, kind: input, shape index: {}]
  %s10 = inlined_call_operand.hbm [shape: f32[1,32], index: 10, kind: input, shape index: {}]
  %s11 = inlined_call_operand.vmem [shape: bf16[32,32], index: 11, kind: input, shape index: {}]
  %s12 = inlined_call_operand.hbm [shape: f32[1,32], index: 12, kind: input, shape index: {}]
  %s13 = inlined_call_operand.vmem [shape: bf16[32,32], index: 13, kind: input, shape index: {}]
  %s14 = inlined_call_operand.vmem [shape: f32[1,32], index: 14, kind: input, shape index: {}]
  %s15 = inlined_call_operand.hbm [shape: bf16[32,32], index: 15, kind: input, shape index: {}]
  %s16 = inlined_call_operand.vmem [shape: f32[1,32], index: 16, kind: input, shape index: {}]
  %s17 = inlined_call_operand.hbm [shape: f32[2,8,32], index: 17, kind: output, shape index: {}]
  %s18 = sld [smem:[#allocation0]]
  $region149: #{tpu_custom_call.1} parent=0
    _
  %s20 = ssub.s32 1, %s18
  %s21 = scalar_select 0, %s20, %s18
  $region1: #{tpu_custom_call.1} parent=0
    #allocation5 [shape = 'u8[8192]{0}', space=vmem, size = 0x2000, scoped, tag = 'input window, operand 0']
    #allocation6 [shape = 's32[2]{0}', space=sflag, size = 0x8, scoped, tag = 'scoped memory for tpu_custom_call.1']
    #allocation7 [shape = 's32[2]{0}', space=sflag, size = 0x8, scoped, tag = 'scoped memory for tpu_custom_call.1']
    #allocation8 [shape = 'u8[16384]{0}', space=vmem, size = 0x4000, scoped, tag = 'input window, operand 1']
    #allocation9 [shape = 's32[2]{0}', space=sflag, size = 0x8, scoped, tag = 'scoped memory for tpu_custom_call.1']
    #allocation10 [shape = 'u8[1024]{0}', space=vmem, size = 0x400, scoped, tag = 'input window, operand 2']
    #allocation11 [shape = 'u8[512]{0}', space=vmem, size = 0x400, scoped, tag = 'input window, operand 4, single buffered']
    #allocation12 [shape = 's32[1]{0}', space=sflag, size = 0x4, scoped, tag = 'scoped memory for tpu_custom_call.1']
    #allocation13 [shape = 'u8[512]{0}', space=vmem, size = 0x400, scoped, tag = 'input window, operand 5, single buffered']
    #allocation14 [shape = 'u8[512]{0}', space=vmem, size = 0x400, scoped, tag = 'input window, operand 6, single buffered']
    #allocation15 [shape = 's32[1]{0}', space=sflag, size = 0x4, scoped, tag = 'scoped memory for tpu_custom_call.1']
    #allocation16 [shape = 'u8[512]{0}', space=vmem, size = 0x400, scoped, tag = 'input window, operand 7, single buffered']
    #allocation17 [shape = 'u8[512]{0}', space=vmem, size = 0x400, scoped, tag = 'input window, operand 8, single buffered']
    #allocation18 [shape = 's32[1]{0}', space=sflag, size = 0x4, scoped, tag = 'scoped memory for tpu_custom_call.1']
    #allocation19 [shape = 'u8[512]{0}', space=vmem, size = 0x400, scoped, tag = 'input window, operand 10, single buffered']
    #allocation20 [shape = 'u8[512]{0}', space=vmem, size = 0x400, scoped, tag = 'input window, operand 12, single buffered']
    #allocation21 [shape = 's32[1]{0}', space=sflag, size = 0x4, scoped, tag = 'scoped memory for tpu_custom_call.1']
    #allocation22 [shape = 'u8[8192]{0}', space=vmem, size = 0x2000, scoped, tag = 'input window, operand 15, single buffered']
    #allocation23 [shape = 'u8[8192]{0}', space=vmem, size = 0x2000, scoped, tag = 'output window, operand 0']
    %22 = vsyncpa [#allocation6], 0
    %s23 = scalar_lea.sflag [#allocation6], 1
    %24 = vsyncpa %s23, 0
    %25 = vsyncpa [#allocation9], 0
    %s26 = scalar_lea.sflag [#allocation9], 1
    %27 = vsyncpa %s26, 0
    %28 = vsyncpa [#allocation12], 0
    %29 = vsyncpa [#allocation15], 0
    %30 = vsyncpa [#allocation18], 0
    %31 = vsyncpa [#allocation21], 0
    %32 = vsyncpa [#allocation7], 0
    %s33 = scalar_lea.sflag [#allocation7], 1
    %34 = vsyncpa %s33, 0
    loop: start=0, step=1, limit=4
    $region2: #{tpu_custom_call.1} parent=1 // loop_pre_header
      _
    $region3: #{tpu_custom_call.1} parent=1 // loop_header
      %s36 = sphi 0, %s40
      %p37 = scmp.ge.s32.totalorder %s36, 4
      %s43 = sphi 0, %s55
      %s44 = sphi 0, %s51
      %s45 = sphi 0, %s43
      %s46 = sphi 0, %s44
      %s47 = sphi 0, %s45
      %s48 = sphi 0, %s46
      %s60 = sphi 0, %s62
      %s63 = sphi 0, %s60
      %s64 = sphi 0, %s63
      %s80 = sphi 0, %s64
      %s86 = sphi 0, %s88
      %s89 = sphi 0, %s86
      %s90 = sphi 0, %s89
      %s106 = sphi 0, %s90
      %s112 = sphi 0, %s114
      %s115 = sphi 0, %s112
      %s116 = sphi 0, %s115
      %s132 = sphi 0, %s116
      %s136 = sphi 0, %s136
      %s138 = sphi 0, %s136
      %s139 = sphi 0, %s138
      %s153 = sphi 0, %s139
      %s157 = sphi 0, %s157
      %s159 = sphi 0, %s157
      %s160 = sphi 0, %s159
      %s174 = sphi 0, %s160
      %s178 = sphi 0, %s178
      %s180 = sphi 0, %s178
      %s181 = sphi 0, %s180
      %s195 = sphi 0, %s181
      %s199 = sphi 0, %s199
      %s201 = sphi 0, %s199
      %s202 = sphi 0, %s201
      %s216 = sphi 0, %s202
      %s220 = sphi 0, %s220
      %s222 = sphi 0, %s220
      %s223 = sphi 0, %s222
      %s237 = sphi 0, %s223
      %s241 = sphi 0, %s241
      %s243 = sphi 0, %s241
      %s244 = sphi 0, %s243
      %s258 = sphi 0, %s244
      %s262 = sphi 0, %s262
      %s264 = sphi 0, %s262
      %s265 = sphi 0, %s264
      %s279 = sphi 0, %s265
      %s283 = sphi 0, %s283
      %s285 = sphi 0, %s283
      %s286 = sphi 0, %s285
      %s300 = sphi 0, %s286
      %s304 = sphi 0, %s304
      %s306 = sphi 0, %s304
      %s307 = sphi 0, %s306
      %s321 = sphi 0, %s307
      %s325 = sphi 0, %s325
      %s327 = sphi 0, %s325
      %s328 = sphi 0, %s327
      %s342 = sphi 0, %s328
      %s346 = sphi 0, %s346
      %s348 = sphi 0, %s346
      %s349 = sphi 0, %s348
      %s363 = sphi 0, %s349
      %s367 = sphi 0, %s367
      %s369 = sphi 0, %s367
      %s370 = sphi 0, %s369
      %s384 = sphi 0, %s370
      %s388 = sphi 0, %s388
      %s390 = sphi 0, %s388
      %s391 = sphi 0, %s390
      %s405 = sphi 0, %s391
      %s409 = sphi 0, %s409
      %s411 = sphi 0, %s409
      %s412 = sphi 0, %s411
      %s426 = sphi 0, %s412
      %s434 = sphi 0, %s436
      %s437 = sphi 0, %s434
      %s438 = sphi 0, %s437
      %s454 = sphi 0, %s438
    $region4: #{tpu_custom_call.1} parent=1 // loop_header_branch
      %39 = sbr.rel (%p37) target = $region8
    $region5: #{tpu_custom_call.1} parent=1 // loop_body
      %s41 = ssub.s32 %s36, 1
      %s42 = ssub.s32 %s36, 2
      %s49 = sadd.s32 1, %s44
      %p50 = scmp.ge.s32.totalorder %s49, 1
      %s51 = scalar_select %p50, 0, %s49
      %s52 = sadd.s32 1, %s43
      %s53 = scalar_select %p50, %s52, %s43
      %p54 = scmp.ge.s32.totalorder %s53, 2
      %s55 = scalar_select %p54, 0, %s53
      %s56 = ssub.s32 %s43, %s55
      %s57 = ssub.s32 %s44, %s51
      %s58 = sor.u32 %s56, %s57
      %p59 = scmp.eq.s32.totalorder %s58, 0
      %s61 = sadd.s32 %s60, 1
      %s62 = scalar_select %p59, %s60, %s61
      %p65 = pneg %p59
      %p66 = scmp.eq.s32.totalorder %s36, 1
      %p67 = por %p65, %p66
      %p68 = scmp.ne.s32.totalorder %s60, %s63
      %p69 = scmp.eq.s32.totalorder %s36, 0
      %p70 = por %p68, %p69
      %p71 = scmp.ne.s32.totalorder %s60, %s63
      %p72 = scmp.eq.s32.totalorder %s41, 1
      %p73 = por %p71, %p72
      %p74 = scmp.ne.s32.totalorder %s63, %s64
      %p75 = scmp.eq.s32.totalorder %s41, 0
      %p76 = por %p74, %p75
      %p77 = scmp.ne.s32.totalorder %s63, %s64
      %p78 = scmp.eq.s32.totalorder %s42, 1
      %p79 = por %p77, %p78
      %p81 = scmp.ne.s32.totalorder %s64, %s80
      %p82 = scmp.eq.s32.totalorder %s42, 0
      %p83 = por %p81, %p82
      %s84 = ssub.s32 %s43, %s55
      %p85 = scmp.eq.s32.totalorder %s84, 0
      %s87 = sadd.s32 %s86, 1
      %s88 = scalar_select %p85, %s86, %s87
      %p91 = pneg %p85
      %p92 = scmp.eq.s32.totalorder %s36, 1
      %p93 = por %p91, %p92
      %p94 = scmp.ne.s32.totalorder %s86, %s89
      %p95 = scmp.eq.s32.totalorder %s36, 0
      %p96 = por %p94, %p95
      %p97 = scmp.ne.s32.totalorder %s86, %s89
      %p98 = scmp.eq.s32.totalorder %s41, 1
      %p99 = por %p97, %p98
      %p100 = scmp.ne.s32.totalorder %s89, %s90
      %p101 = scmp.eq.s32.totalorder %s41, 0
      %p102 = por %p100, %p101
      %p103 = scmp.ne.s32.totalorder %s89, %s90
      %p104 = scmp.eq.s32.totalorder %s42, 1
      %p105 = por %p103, %p104
      %p107 = scmp.ne.s32.totalorder %s90, %s106
      %p108 = scmp.eq.s32.totalorder %s42, 0
      %p109 = por %p107, %p108
      %s110 = ssub.s32 %s43, %s55
      %p111 = scmp.eq.s32.totalorder %s110, 0
      %s113 = sadd.s32 %s112, 1
      %s114 = scalar_select %p111, %s112, %s113
      %p117 = pneg %p111
      %p118 = scmp.eq.s32.totalorder %s36, 1
      %p119 = por %p117, %p118
      %p120 = scmp.ne.s32.totalorder %s112, %s115
      %p121 = scmp.eq.s32.totalorder %s36, 0
      %p122 = por %p120, %p121
      %p123 = scmp.ne.s32.totalorder %s112, %s115
      %p124 = scmp.eq.s32.totalorder %s41, 1
      %p125 = por %p123, %p124
      %p126 = scmp.ne.s32.totalorder %s115, %s116
      %p127 = scmp.eq.s32.totalorder %s41, 0
      %p128 = por %p126, %p127
      %p129 = scmp.ne.s32.totalorder %s115, %s116
      %p130 = scmp.eq.s32.totalorder %s42, 1
      %p131 = por %p129, %p130
      %p133 = scmp.ne.s32.totalorder %s116, %s132
      %p134 = scmp.eq.s32.totalorder %s42, 0
      %p135 = por %p133, %p134
      %s137 = sadd.s32 %s136, 1
      %p140 = scmp.eq.s32.totalorder %s36, 1
      %p141 = scmp.ne.s32.totalorder %s136, %s138
      %p142 = scmp.eq.s32.totalorder %s36, 0
      %p143 = por %p141, %p142
      %p144 = scmp.ne.s32.totalorder %s136, %s138
      %p145 = scmp.eq.s32.totalorder %s41, 1
      %p146 = por %p144, %p145
      %p147 = scmp.ne.s32.totalorder %s138, %s139
      %p148 = scmp.eq.s32.totalorder %s41, 0
      %p149 = por %p147, %p148
      %p150 = scmp.ne.s32.totalorder %s138, %s139
      %p151 = scmp.eq.s32.totalorder %s42, 1
      %p152 = por %p150, %p151
      %p154 = scmp.ne.s32.totalorder %s139, %s153
      %p155 = scmp.eq.s32.totalorder %s42, 0
      %p156 = por %p154, %p155
      %s158 = sadd.s32 %s157, 1
      %p161 = scmp.eq.s32.totalorder %s36, 1
      %p162 = scmp.ne.s32.totalorder %s157, %s159
      %p163 = scmp.eq.s32.totalorder %s36, 0
      %p164 = por %p162, %p163
      %p165 = scmp.ne.s32.totalorder %s157, %s159
      %p166 = scmp.eq.s32.totalorder %s41, 1
      %p167 = por %p165, %p166
      %p168 = scmp.ne.s32.totalorder %s159, %s160
      %p169 = scmp.eq.s32.totalorder %s41, 0
      %p170 = por %p168, %p169
      %p171 = scmp.ne.s32.totalorder %s159, %s160
      %p172 = scmp.eq.s32.totalorder %s42, 1
      %p173 = por %p171, %p172
      %p175 = scmp.ne.s32.totalorder %s160, %s174
      %p176 = scmp.eq.s32.totalorder %s42, 0
      %p177 = por %p175, %p176
      %s179 = sadd.s32 %s178, 1
      %p182 = scmp.eq.s32.totalorder %s36, 1
      %p183 = scmp.ne.s32.totalorder %s178, %s180
      %p184 = scmp.eq.s32.totalorder %s36, 0
      %p185 = por %p183, %p184
      %p186 = scmp.ne.s32.totalorder %s178, %s180
      %p187 = scmp.eq.s32.totalorder %s41, 1
      %p188 = por %p186, %p187
      %p189 = scmp.ne.s32.totalorder %s180, %s181
      %p190 = scmp.eq.s32.totalorder %s41, 0
      %p191 = por %p189, %p190
      %p192 = scmp.ne.s32.totalorder %s180, %s181
      %p193 = scmp.eq.s32.totalorder %s42, 1
      %p194 = por %p192, %p193
      %p196 = scmp.ne.s32.totalorder %s181, %s195
      %p197 = scmp.eq.s32.totalorder %s42, 0
      %p198 = por %p196, %p197
      %s200 = sadd.s32 %s199, 1
      %p203 = scmp.eq.s32.totalorder %s36, 1
      %p204 = scmp.ne.s32.totalorder %s199, %s201
      %p205 = scmp.eq.s32.totalorder %s36, 0
      %p206 = por %p204, %p205
      %p207 = scmp.ne.s32.totalorder %s199, %s201
      %p208 = scmp.eq.s32.totalorder %s41, 1
      %p209 = por %p207, %p208
      %p210 = scmp.ne.s32.totalorder %s201, %s202
      %p211 = scmp.eq.s32.totalorder %s41, 0
      %p212 = por %p210, %p211
      %p213 = scmp.ne.s32.totalorder %s201, %s202
      %p214 = scmp.eq.s32.totalorder %s42, 1
      %p215 = por %p213, %p214
      %p217 = scmp.ne.s32.totalorder %s202, %s216
      %p218 = scmp.eq.s32.totalorder %s42, 0
      %p219 = por %p217, %p218
      %s221 = sadd.s32 %s220, 1
      %p224 = scmp.eq.s32.totalorder %s36, 1
      %p225 = scmp.ne.s32.totalorder %s220, %s222
      %p226 = scmp.eq.s32.totalorder %s36, 0
      %p227 = por %p225, %p226
      %p228 = scmp.ne.s32.totalorder %s220, %s222
      %p229 = scmp.eq.s32.totalorder %s41, 1
      %p230 = por %p228, %p229
      %p231 = scmp.ne.s32.totalorder %s222, %s223
      %p232 = scmp.eq.s32.totalorder %s41, 0
      %p233 = por %p231, %p232
      %p234 = scmp.ne.s32.totalorder %s222, %s223
      %p235 = scmp.eq.s32.totalorder %s42, 1
      %p236 = por %p234, %p235
      %p238 = scmp.ne.s32.totalorder %s223, %s237
      %p239 = scmp.eq.s32.totalorder %s42, 0
      %p240 = por %p238, %p239
      %s242 = sadd.s32 %s241, 1
      %p245 = scmp.eq.s32.totalorder %s36, 1
      %p246 = scmp.ne.s32.totalorder %s241, %s243
      %p247 = scmp.eq.s32.totalorder %s36, 0
      %p248 = por %p246, %p247
      %p249 = scmp.ne.s32.totalorder %s241, %s243
      %p250 = scmp.eq.s32.totalorder %s41, 1
      %p251 = por %p249, %p250
      %p252 = scmp.ne.s32.totalorder %s243, %s244
      %p253 = scmp.eq.s32.totalorder %s41, 0
      %p254 = por %p252, %p253
      %p255 = scmp.ne.s32.totalorder %s243, %s244
      %p256 = scmp.eq.s32.totalorder %s42, 1
      %p257 = por %p255, %p256
      %p259 = scmp.ne.s32.totalorder %s244, %s258
      %p260 = scmp.eq.s32.totalorder %s42, 0
      %p261 = por %p259, %p260
      %s263 = sadd.s32 %s262, 1
      %p266 = scmp.eq.s32.totalorder %s36, 1
      %p267 = scmp.ne.s32.totalorder %s262, %s264
      %p268 = scmp.eq.s32.totalorder %s36, 0
      %p269 = por %p267, %p268
      %p270 = scmp.ne.s32.totalorder %s262, %s264
      %p271 = scmp.eq.s32.totalorder %s41, 1
      %p272 = por %p270, %p271
      %p273 = scmp.ne.s32.totalorder %s264, %s265
      %p274 = scmp.eq.s32.totalorder %s41, 0
      %p275 = por %p273, %p274
      %p276 = scmp.ne.s32.totalorder %s264, %s265
      %p277 = scmp.eq.s32.totalorder %s42, 1
      %p278 = por %p276, %p277
      %p280 = scmp.ne.s32.totalorder %s265, %s279
      %p281 = scmp.eq.s32.totalorder %s42, 0
      %p282 = por %p280, %p281
      %s284 = sadd.s32 %s283, 1
      %p287 = scmp.eq.s32.totalorder %s36, 1
      %p288 = scmp.ne.s32.totalorder %s283, %s285
      %p289 = scmp.eq.s32.totalorder %s36, 0
      %p290 = por %p288, %p289
      %p291 = scmp.ne.s32.totalorder %s283, %s285
      %p292 = scmp.eq.s32.totalorder %s41, 1
      %p293 = por %p291, %p292
      %p294 = scmp.ne.s32.totalorder %s285, %s286
      %p295 = scmp.eq.s32.totalorder %s41, 0
      %p296 = por %p294, %p295
      %p297 = scmp.ne.s32.totalorder %s285, %s286
      %p298 = scmp.eq.s32.totalorder %s42, 1
      %p299 = por %p297, %p298
      %p301 = scmp.ne.s32.totalorder %s286, %s300
      %p302 = scmp.eq.s32.totalorder %s42, 0
      %p303 = por %p301, %p302
      %s305 = sadd.s32 %s304, 1
      %p308 = scmp.eq.s32.totalorder %s36, 1
      %p309 = scmp.ne.s32.totalorder %s304, %s306
      %p310 = scmp.eq.s32.totalorder %s36, 0
      %p311 = por %p309, %p310
      %p312 = scmp.ne.s32.totalorder %s304, %s306
      %p313 = scmp.eq.s32.totalorder %s41, 1
      %p314 = por %p312, %p313
      %p315 = scmp.ne.s32.totalorder %s306, %s307
      %p316 = scmp.eq.s32.totalorder %s41, 0
      %p317 = por %p315, %p316
      %p318 = scmp.ne.s32.totalorder %s306, %s307
      %p319 = scmp.eq.s32.totalorder %s42, 1
      %p320 = por %p318, %p319
      %p322 = scmp.ne.s32.totalorder %s307, %s321
      %p323 = scmp.eq.s32.totalorder %s42, 0
      %p324 = por %p322, %p323
      %s326 = sadd.s32 %s325, 1
      %p329 = scmp.eq.s32.totalorder %s36, 1
      %p330 = scmp.ne.s32.totalorder %s325, %s327
      %p331 = scmp.eq.s32.totalorder %s36, 0
      %p332 = por %p330, %p331
      %p333 = scmp.ne.s32.totalorder %s325, %s327
      %p334 = scmp.eq.s32.totalorder %s41, 1
      %p335 = por %p333, %p334
      %p336 = scmp.ne.s32.totalorder %s327, %s328
      %p337 = scmp.eq.s32.totalorder %s41, 0
      %p338 = por %p336, %p337
      %p339 = scmp.ne.s32.totalorder %s327, %s328
      %p340 = scmp.eq.s32.totalorder %s42, 1
      %p341 = por %p339, %p340
      %p343 = scmp.ne.s32.totalorder %s328, %s342
      %p344 = scmp.eq.s32.totalorder %s42, 0
      %p345 = por %p343, %p344
      %s347 = sadd.s32 %s346, 1
      %p350 = scmp.eq.s32.totalorder %s36, 1
      %p351 = scmp.ne.s32.totalorder %s346, %s348
      %p352 = scmp.eq.s32.totalorder %s36, 0
      %p353 = por %p351, %p352
      %p354 = scmp.ne.s32.totalorder %s346, %s348
      %p355 = scmp.eq.s32.totalorder %s41, 1
      %p356 = por %p354, %p355
      %p357 = scmp.ne.s32.totalorder %s348, %s349
      %p358 = scmp.eq.s32.totalorder %s41, 0
      %p359 = por %p357, %p358
      %p360 = scmp.ne.s32.totalorder %s348, %s349
      %p361 = scmp.eq.s32.totalorder %s42, 1
      %p362 = por %p360, %p361
      %p364 = scmp.ne.s32.totalorder %s349, %s363
      %p365 = scmp.eq.s32.totalorder %s42, 0
      %p366 = por %p364, %p365
      %s368 = sadd.s32 %s367, 1
      %p371 = scmp.eq.s32.totalorder %s36, 1
      %p372 = scmp.ne.s32.totalorder %s367, %s369
      %p373 = scmp.eq.s32.totalorder %s36, 0
      %p374 = por %p372, %p373
      %p375 = scmp.ne.s32.totalorder %s367, %s369
      %p376 = scmp.eq.s32.totalorder %s41, 1
      %p377 = por %p375, %p376
      %p378 = scmp.ne.s32.totalorder %s369, %s370
      %p379 = scmp.eq.s32.totalorder %s41, 0
      %p380 = por %p378, %p379
      %p381 = scmp.ne.s32.totalorder %s369, %s370
      %p382 = scmp.eq.s32.totalorder %s42, 1
      %p383 = por %p381, %p382
      %p385 = scmp.ne.s32.totalorder %s370, %s384
      %p386 = scmp.eq.s32.totalorder %s42, 0
      %p387 = por %p385, %p386
      %s389 = sadd.s32 %s388, 1
      %p392 = scmp.eq.s32.totalorder %s36, 1
      %p393 = scmp.ne.s32.totalorder %s388, %s390
      %p394 = scmp.eq.s32.totalorder %s36, 0
      %p395 = por %p393, %p394
      %p396 = scmp.ne.s32.totalorder %s388, %s390
      %p397 = scmp.eq.s32.totalorder %s41, 1
      %p398 = por %p396, %p397
      %p399 = scmp.ne.s32.totalorder %s390, %s391
      %p400 = scmp.eq.s32.totalorder %s41, 0
      %p401 = por %p399, %p400
      %p402 = scmp.ne.s32.totalorder %s390, %s391
      %p403 = scmp.eq.s32.totalorder %s42, 1
      %p404 = por %p402, %p403
      %p406 = scmp.ne.s32.totalorder %s391, %s405
      %p407 = scmp.eq.s32.totalorder %s42, 0
      %p408 = por %p406, %p407
      %s410 = sadd.s32 %s409, 1
      %p413 = scmp.eq.s32.totalorder %s36, 1
      %p414 = scmp.ne.s32.totalorder %s409, %s411
      %p415 = scmp.eq.s32.totalorder %s36, 0
      %p416 = por %p414, %p415
      %p417 = scmp.ne.s32.totalorder %s409, %s411
      %p418 = scmp.eq.s32.totalorder %s41, 1
      %p419 = por %p417, %p418
      %p420 = scmp.ne.s32.totalorder %s411, %s412
      %p421 = scmp.eq.s32.totalorder %s41, 0
      %p422 = por %p420, %p421
      %p423 = scmp.ne.s32.totalorder %s411, %s412
      %p424 = scmp.eq.s32.totalorder %s42, 1
      %p425 = por %p423, %p424
      %p427 = scmp.ne.s32.totalorder %s412, %s426
      %p428 = scmp.eq.s32.totalorder %s42, 0
      %p429 = por %p427, %p428
      %s430 = ssub.s32 %s43, %s55
      %s431 = ssub.s32 %s44, %s51
      %s432 = sor.u32 %s430, %s431
      %p433 = scmp.eq.s32.totalorder %s432, 0
      %s435 = sadd.s32 %s434, 1
      %s436 = scalar_select %p433, %s434, %s435
      %p439 = pneg %p433
      %p440 = scmp.eq.s32.totalorder %s36, 1
      %p441 = por %p439, %p440
      %p442 = scmp.ne.s32.totalorder %s434, %s437
      %p443 = scmp.eq.s32.totalorder %s36, 0
      %p444 = por %p442, %p443
      %p445 = scmp.ne.s32.totalorder %s434, %s437
      %p446 = scmp.eq.s32.totalorder %s41, 1
      %p447 = por %p445, %p446
      %p448 = scmp.ne.s32.totalorder %s437, %s438
      %p449 = scmp.eq.s32.totalorder %s41, 0
      %p450 = por %p448, %p449
      %p451 = scmp.ne.s32.totalorder %s437, %s438
      %p452 = scmp.eq.s32.totalorder %s42, 1
      %p453 = por %p451, %p452
      %p455 = scmp.ne.s32.totalorder %s438, %s454
      %p456 = scmp.eq.s32.totalorder %s42, 0
      %p457 = por %p455, %p456
      %p458 = scmp.le.s32.totalorder 1, %s36
      %p459 = scmp.lt.s32.totalorder %s36, 3
      %p460 = pnand %p458, %p459
      %p461 = pneg %p460
      // Predicated region
      $region9: #{tpu_custom_call.1} parent=5 // pred_check
        _
      $region10: #{tpu_custom_call.1} parent=5 // pred_check_branch
        %463 = sbr.rel (%p460) target = $region12
      $region11: #{tpu_custom_call.1} parent=5 // pred_region
        %s464 = ssub.s32 %s36, 1
        // Predicated region
        $region13: #{tpu_custom_call.1} parent=11 // pred_check
          %p465 = pneg %p149
        $region14: #{tpu_custom_call.1} parent=11 // pred_check_branch
          %467 = sbr.rel (%p465) target = $region16
        $region15: #{tpu_custom_call.1} parent=11 // pred_region
          _
        $region16: #{tpu_custom_call.1} parent=11 // pred_fallthru
          _
        // Predicated region
        $region17: #{tpu_custom_call.1} parent=11 // pred_check
          %p468 = pneg %p170
        $region18: #{tpu_custom_call.1} parent=11 // pred_check_branch
          %470 = sbr.rel (%p468) target = $region20
        $region19: #{tpu_custom_call.1} parent=11 // pred_region
          %s472 = ssub.s32 16, 16
          %473 = vsyncadd [#allocation12], %s472
          %s475 = sshll.u32 [#allocation11], 4
          %s476 = int_to_ptr.vmem [resolvable:$true] %s475
          %478 = dma.hbm_to_vmem [thread:$0]  %s4, 16, %s476, [#allocation12]
        $region20: #{tpu_custom_call.1} parent=11 // pred_fallthru
          _
        // Predicated region
        $region21: #{tpu_custom_call.1} parent=11 // pred_check
          %p479 = pneg %p191
        $region22: #{tpu_custom_call.1} parent=11 // pred_check_branch
          %481 = sbr.rel (%p479) target = $region24
        $region23: #{tpu_custom_call.1} parent=11 // pred_region
          %s483 = ssub.s32 16, 16
          %484 = vsyncadd [#allocation12], %s483
          %s486 = sshll.u32 [#allocation13], 4
          %s487 = int_to_ptr.vmem [resolvable:$true] %s486
          %489 = dma.hbm_to_vmem [thread:$0]  %s5, 16, %s487, [#allocation12]
        $region24: #{tpu_custom_call.1} parent=11 // pred_fallthru
          _
        // Predicated region
        $region25: #{tpu_custom_call.1} parent=11 // pred_check
          %p490 = pneg %p212
        $region26: #{tpu_custom_call.1} parent=11 // pred_check_branch
          %492 = sbr.rel (%p490) target = $region28
        $region27: #{tpu_custom_call.1} parent=11 // pred_region
          %s494 = ssub.s32 16, 16
          %495 = vsyncadd [#allocation15], %s494
          %s497 = sshll.u32 [#allocation14], 4
          %s498 = int_to_ptr.vmem [resolvable:$true] %s497
          %500 = dma.hbm_to_vmem [thread:$0]  %s6, 16, %s498, [#allocation15]
        $region28: #{tpu_custom_call.1} parent=11 // pred_fallthru
          _
        // Predicated region
        $region29: #{tpu_custom_call.1} parent=11 // pred_check
          %p501 = pneg %p233
        $region30: #{tpu_custom_call.1} parent=11 // pred_check_branch
          %503 = sbr.rel (%p501) target = $region32
        $region31: #{tpu_custom_call.1} parent=11 // pred_region
          %s505 = ssub.s32 16, 16
          %506 = vsyncadd [#allocation15], %s505
          %s508 = sshll.u32 [#allocation16], 4
          %s509 = int_to_ptr.vmem [resolvable:$true] %s508
          %511 = dma.hbm_to_vmem [thread:$0]  %s7, 16, %s509, [#allocation15]
        $region32: #{tpu_custom_call.1} parent=11 // pred_fallthru
          _
        // Predicated region
        $region33: #{tpu_custom_call.1} parent=11 // pred_check
          %p512 = pneg %p254
        $region34: #{tpu_custom_call.1} parent=11 // pred_check_branch
          %514 = sbr.rel (%p512) target = $region36
        $region35: #{tpu_custom_call.1} parent=11 // pred_region
          %s516 = ssub.s32 16, 16
          %517 = vsyncadd [#allocation18], %s516
          %s519 = sshll.u32 [#allocation17], 4
          %s520 = int_to_ptr.vmem [resolvable:$true] %s519
          %522 = dma.hbm_to_vmem [thread:$0]  %s8, 16, %s520, [#allocation18]
        $region36: #{tpu_custom_call.1} parent=11 // pred_fallthru
          _
        // Predicated region
        $region37: #{tpu_custom_call.1} parent=11 // pred_check
          %p523 = pneg %p275
        $region38: #{tpu_custom_call.1} parent=11 // pred_check_branch
          %525 = sbr.rel (%p523) target = $region40
        $region39: #{tpu_custom_call.1} parent=11 // pred_region
          _
        $region40: #{tpu_custom_call.1} parent=11 // pred_fallthru
          _
        // Predicated region
        $region41: #{tpu_custom_call.1} parent=11 // pred_check
          %p526 = pneg %p296
        $region42: #{tpu_custom_call.1} parent=11 // pred_check_branch
          %528 = sbr.rel (%p526) target = $region44
        $region43: #{tpu_custom_call.1} parent=11 // pred_region
          %s530 = ssub.s32 16, 16
          %531 = vsyncadd [#allocation18], %s530
          %s533 = sshll.u32 [#allocation19], 4
          %s534 = int_to_ptr.vmem [resolvable:$true] %s533
          %536 = dma.hbm_to_vmem [thread:$0]  %s10, 16, %s534, [#allocation18]
        $region44: #{tpu_custom_call.1} parent=11 // pred_fallthru
          _
        // Predicated region
        $region45: #{tpu_custom_call.1} parent=11 // pred_check
          %p537 = pneg %p317
        $region46: #{tpu_custom_call.1} parent=11 // pred_check_branch
          %539 = sbr.rel (%p537) target = $region48
        $region47: #{tpu_custom_call.1} parent=11 // pred_region
          _
        $region48: #{tpu_custom_call.1} parent=11 // pred_fallthru
          _
        // Predicated region
        $region49: #{tpu_custom_call.1} parent=11 // pred_check
          %p540 = pneg %p338
        $region50: #{tpu_custom_call.1} parent=11 // pred_check_branch
          %542 = sbr.rel (%p540) target = $region52
        $region51: #{tpu_custom_call.1} parent=11 // pred_region
          %s544 = ssub.s32 16, 16
          %545 = vsyncadd [#allocation21], %s544
          %s547 = sshll.u32 [#allocation20], 4
          %s548 = int_to_ptr.vmem [resolvable:$true] %s547
          %550 = dma.hbm_to_vmem [thread:$0]  %s12, 16, %s548, [#allocation21]
        $region52: #{tpu_custom_call.1} parent=11 // pred_fallthru
          _
        // Predicated region
        $region53: #{tpu_custom_call.1} parent=11 // pred_check
          %p551 = pneg %p359
        $region54: #{tpu_custom_call.1} parent=11 // pred_check_branch
          %553 = sbr.rel (%p551) target = $region56
        $region55: #{tpu_custom_call.1} parent=11 // pred_region
          _
        $region56: #{tpu_custom_call.1} parent=11 // pred_fallthru
          _
        // Predicated region
        $region57: #{tpu_custom_call.1} parent=11 // pred_check
          %p554 = pneg %p380
        $region58: #{tpu_custom_call.1} parent=11 // pred_check_branch
          %556 = sbr.rel (%p554) target = $region60
        $region59: #{tpu_custom_call.1} parent=11 // pred_region
          _
        $region60: #{tpu_custom_call.1} parent=11 // pred_fallthru
          _
        // Predicated region
        $region61: #{tpu_custom_call.1} parent=11 // pred_check
          %p557 = pneg %p401
        $region62: #{tpu_custom_call.1} parent=11 // pred_check_branch
          %559 = sbr.rel (%p557) target = $region64
        $region63: #{tpu_custom_call.1} parent=11 // pred_region
          %s561 = ssub.s32 256, 256
          %562 = vsyncadd [#allocation21], %s561
          %s563 = sshll.u32 [#allocation22], 4
          %s564 = int_to_ptr.vmem [resolvable:$true] %s563
          %569 = dma.hbm_to_vmem [thread:$0]  %s15, 256, %s564, [#allocation21], 64, 64, 4
        $region64: #{tpu_custom_call.1} parent=11 // pred_fallthru
          _
        // Predicated region
        $region65: #{tpu_custom_call.1} parent=11 // pred_check
          %p570 = pneg %p422
        $region66: #{tpu_custom_call.1} parent=11 // pred_check_branch
          %572 = sbr.rel (%p570) target = $region68
        $region67: #{tpu_custom_call.1} parent=11 // pred_region
          _
        $region68: #{tpu_custom_call.1} parent=11 // pred_fallthru
          _
      $region12: #{tpu_custom_call.1} parent=5 // pred_fallthru
        _
      %p573 = scmp.lt.s32.totalorder %s36, 2
      // Predicated region
      $region69: #{tpu_custom_call.1} parent=5 // pred_check
        %p574 = pneg %p573
      $region70: #{tpu_custom_call.1} parent=5 // pred_check_branch
        %576 = sbr.rel (%p574) target = $region72
      $region71: #{tpu_custom_call.1} parent=5 // pred_region
        // Predicated region
        $region73: #{tpu_custom_call.1} parent=71 // pred_check
          %p577 = pneg %p70
        $region74: #{tpu_custom_call.1} parent=71 // pred_check_branch
          %579 = sbr.rel (%p577) target = $region76
        $region75: #{tpu_custom_call.1} parent=71 // pred_region
          %s580 = sand.u32 %s60, 1
          %s581 = scalar_lea.sflag [#allocation6], %s580
          %s582 = sand.u32 %s60, 1
          %s583 = smul.addr %s582, 8
          %s584 = scalar_lea.vmem [#allocation5], %s583
          %s586 = ssub.s32 128, 128
          %587 = vsyncadd %s581, %s586
          %s588 = sadd.s32 %s44, %s43
          %s589 = smul.addr %s588, 128
          %s590 = scalar_lea.hbm %s0, %s589
          %s592 = sshll.u32 %s584, 4
          %s593 = int_to_ptr.vmem [resolvable:$true] %s592
          %595 = dma.hbm_to_vmem [thread:$0]  %s590, 128, %s593, %s581
        $region76: #{tpu_custom_call.1} parent=71 // pred_fallthru
          _
        // Predicated region
        $region77: #{tpu_custom_call.1} parent=71 // pred_check
          %p596 = pneg %p96
        $region78: #{tpu_custom_call.1} parent=71 // pred_check_branch
          %598 = sbr.rel (%p596) target = $region80
        $region79: #{tpu_custom_call.1} parent=71 // pred_region
          %s599 = sand.u32 %s36, 1
          %s600 = scalar_lea.sflag [#allocation9], %s599
          %s601 = sand.u32 %s86, 1
          %s602 = smul.addr %s601, 16
          %s603 = scalar_lea.vmem [#allocation8], %s602
          %s605 = ssub.s32 256, 256
          %606 = vsyncadd %s600, %s605
          %s607 = smul.addr %s43, 2
          %s608 = smul.addr %s607, 128
          %s609 = scalar_lea.hbm %s1, %s608
          %s610 = sshll.u32 %s603, 4
          %s611 = int_to_ptr.vmem [resolvable:$true] %s610
          %616 = dma.hbm_to_vmem [thread:$0]  %s609, 256, %s611, %s600, 128, 128, 8
        $region80: #{tpu_custom_call.1} parent=71 // pred_fallthru
          _
        // Predicated region
        $region81: #{tpu_custom_call.1} parent=71 // pred_check
          %p617 = pneg %p122
        $region82: #{tpu_custom_call.1} parent=71 // pred_check_branch
          %619 = sbr.rel (%p617) target = $region84
        $region83: #{tpu_custom_call.1} parent=71 // pred_region
          %s620 = sand.u32 %s36, 1
          %s621 = scalar_lea.sflag [#allocation9], %s620
          %s622 = sand.u32 %s112, 1
          %s623 = scalar_lea.vmem [#allocation10], %s622
          %s625 = ssub.s32 16, 16
          %626 = vsyncadd %s621, %s625
          %s627 = smul.addr %s43, 16
          %s628 = scalar_lea.hbm %s2, %s627
          %s630 = sshll.u32 %s623, 4
          %s631 = int_to_ptr.vmem [resolvable:$true] %s630
          %633 = dma.hbm_to_vmem [thread:$0]  %s628, 16, %s631, %s621
        $region84: #{tpu_custom_call.1} parent=71 // pred_fallthru
          _
      $region72: #{tpu_custom_call.1} parent=5 // pred_fallthru
        _
      %p634 = scmp.le.s32.totalorder 1, %s36
      %p635 = scmp.lt.s32.totalorder %s36, 3
      %p636 = pnand %p634, %p635
      %p637 = pneg %p636
      // Predicated region
      $region85: #{tpu_custom_call.1} parent=5 // pred_check
        _
      $region86: #{tpu_custom_call.1} parent=5 // pred_check_branch
        %639 = sbr.rel (%p636) target = $region88
      $region87: #{tpu_custom_call.1} parent=5 // pred_region
        %s640 = ssub.s32 %s36, 1
        %s641 = sand.u32 %s63, 1
        %s642 = scalar_lea.sflag [#allocation6], %s641
        %s643 = sand.u32 %s63, 1
        %s644 = smul.addr %s643, 8
        %s645 = scalar_lea.vmem [#allocation5], %s644
        // Predicated region
        $region89: #{tpu_custom_call.1} parent=87 // pred_check
          %p646 = pneg %p76
        $region90: #{tpu_custom_call.1} parent=87 // pred_check_branch
          %648 = sbr.rel (%p646) target = $region92
        $region91: #{tpu_custom_call.1} parent=87 // pred_region
          %649 = dma.done %s642, 128
        $region92: #{tpu_custom_call.1} parent=87 // pred_fallthru
          _
        %s650 = sand.u32 %s41, 1
        %s651 = scalar_lea.sflag [#allocation9], %s650
        %s652 = sand.u32 %s89, 1
        %s653 = smul.addr %s652, 16
        %s654 = scalar_lea.vmem [#allocation8], %s653
        // Predicated region
        $region93: #{tpu_custom_call.1} parent=87 // pred_check
          %p655 = pneg %p102
        $region94: #{tpu_custom_call.1} parent=87 // pred_check_branch
          %657 = sbr.rel (%p655) target = $region96
        $region95: #{tpu_custom_call.1} parent=87 // pred_region
          %658 = dma.done %s651, 256
        $region96: #{tpu_custom_call.1} parent=87 // pred_fallthru
          _
        %s659 = sand.u32 %s41, 1
        %s660 = scalar_lea.sflag [#allocation9], %s659
        %s661 = sand.u32 %s115, 1
        %s662 = scalar_lea.vmem [#allocation10], %s661
        // Predicated region
        $region97: #{tpu_custom_call.1} parent=87 // pred_check
          %p663 = pneg %p128
        $region98: #{tpu_custom_call.1} parent=87 // pred_check_branch
          %665 = sbr.rel (%p663) target = $region100
        $region99: #{tpu_custom_call.1} parent=87 // pred_region
          %666 = dma.done %s660, 16
        $region100: #{tpu_custom_call.1} parent=87 // pred_fallthru
          _
        // Predicated region
        $region101: #{tpu_custom_call.1} parent=87 // pred_check
          %p667 = pneg %p170
        $region102: #{tpu_custom_call.1} parent=87 // pred_check_branch
          %669 = sbr.rel (%p667) target = $region104
        $region103: #{tpu_custom_call.1} parent=87 // pred_region
          %670 = dma.done [#allocation12], 16
        $region104: #{tpu_custom_call.1} parent=87 // pred_fallthru
          _
        // Predicated region
        $region105: #{tpu_custom_call.1} parent=87 // pred_check
          %p671 = pneg %p191
        $region106: #{tpu_custom_call.1} parent=87 // pred_check_branch
          %673 = sbr.rel (%p671) target = $region108
        $region107: #{tpu_custom_call.1} parent=87 // pred_region
          %674 = dma.done [#allocation12], 16
        $region108: #{tpu_custom_call.1} parent=87 // pred_fallthru
          _
        // Predicated region
        $region109: #{tpu_custom_call.1} parent=87 // pred_check
          %p675 = pneg %p212
        $region110: #{tpu_custom_call.1} parent=87 // pred_check_branch
          %677 = sbr.rel (%p675) target = $region112
        $region111: #{tpu_custom_call.1} parent=87 // pred_region
          %678 = dma.done [#allocation15], 16
        $region112: #{tpu_custom_call.1} parent=87 // pred_fallthru
          _
        // Predicated region
        $region113: #{tpu_custom_call.1} parent=87 // pred_check
          %p679 = pneg %p233
        $region114: #{tpu_custom_call.1} parent=87 // pred_check_branch
          %681 = sbr.rel (%p679) target = $region116
        $region115: #{tpu_custom_call.1} parent=87 // pred_region
          %682 = dma.done [#allocation15], 16
        $region116: #{tpu_custom_call.1} parent=87 // pred_fallthru
          _
        // Predicated region
        $region117: #{tpu_custom_call.1} parent=87 // pred_check
          %p683 = pneg %p254
        $region118: #{tpu_custom_call.1} parent=87 // pred_check_branch
          %685 = sbr.rel (%p683) target = $region120
        $region119: #{tpu_custom_call.1} parent=87 // pred_region
          %686 = dma.done [#allocation18], 16
        $region120: #{tpu_custom_call.1} parent=87 // pred_fallthru
          _
        // Predicated region
        $region121: #{tpu_custom_call.1} parent=87 // pred_check
          %p687 = pneg %p296
        $region122: #{tpu_custom_call.1} parent=87 // pred_check_branch
          %689 = sbr.rel (%p687) target = $region124
        $region123: #{tpu_custom_call.1} parent=87 // pred_region
          %690 = dma.done [#allocation18], 16
        $region124: #{tpu_custom_call.1} parent=87 // pred_fallthru
          _
        // Predicated region
        $region125: #{tpu_custom_call.1} parent=87 // pred_check
          %p691 = pneg %p338
        $region126: #{tpu_custom_call.1} parent=87 // pred_check_branch
          %693 = sbr.rel (%p691) target = $region128
        $region127: #{tpu_custom_call.1} parent=87 // pred_region
          %694 = dma.done [#allocation21], 16
        $region128: #{tpu_custom_call.1} parent=87 // pred_fallthru
          _
        // Predicated region
        $region129: #{tpu_custom_call.1} parent=87 // pred_check
          %p695 = pneg %p401
        $region130: #{tpu_custom_call.1} parent=87 // pred_check_branch
          %697 = sbr.rel (%p695) target = $region132
        $region131: #{tpu_custom_call.1} parent=87 // pred_region
          %698 = dma.done [#allocation21], 256
        $region132: #{tpu_custom_call.1} parent=87 // pred_fallthru
          _
        %s699 = sand.u32 %s63, 1
        %s700 = scalar_lea.sflag [#allocation6], %s699
        %s701 = sand.u32 %s63, 1
        %s702 = smul.addr %s701, 8
        %s703 = scalar_lea.vmem [#allocation5], %s702
        %p704 = pneg %p76
        %p705 = pneg %p73
        %s706 = sand.u32 %s41, 1
        %s707 = scalar_lea.sflag [#allocation9], %s706
        %s708 = sand.u32 %s89, 1
        %s709 = smul.addr %s708, 16
        %s710 = scalar_lea.vmem [#allocation8], %s709
        %p711 = pneg %p102
        %p712 = pneg %p99
        %s713 = sand.u32 %s41, 1
        %s714 = scalar_lea.sflag [#allocation9], %s713
        %s715 = sand.u32 %s115, 1
        %s716 = scalar_lea.vmem [#allocation10], %s715
        %p717 = pneg %p128
        %p718 = pneg %p125
        %p719 = pneg %p149
        %p720 = pneg %p146
        %p721 = pneg %p170
        %p722 = pneg %p167
        %p723 = pneg %p191
        %p724 = pneg %p188
        %p725 = pneg %p212
        %p726 = pneg %p209
        %p727 = pneg %p233
        %p728 = pneg %p230
        %p729 = pneg %p254
        %p730 = pneg %p251
        %p731 = pneg %p275
        %p732 = pneg %p272
        %p733 = pneg %p296
        %p734 = pneg %p293
        %p735 = pneg %p317
        %p736 = pneg %p314
        %p737 = pneg %p338
        %p738 = pneg %p335
        %p739 = pneg %p359
        %p740 = pneg %p356
        %p741 = pneg %p380
        %p742 = pneg %p377
        %p743 = pneg %p401
        %p744 = pneg %p398
        %p745 = pneg %p422
        %p746 = pneg %p419
        %p747 = pneg %p450
        %p748 = pneg %p447
        %s749 = sand.u32 %s437, 1
        %s750 = scalar_lea.sflag [#allocation7], %s749
        %s751 = sand.u32 %s437, 1
        %s752 = smul.addr %s751, 8
        %s753 = scalar_lea.vmem [#allocation23], %s752
        %p755 = scmp.eq.s32.totalorder %s46, 0
        // Predicated region
        $region133: #{tpu_custom_call.1} parent=87 // pred_check
          %p756 = pneg %p755
        $region134: #{tpu_custom_call.1} parent=87 // pred_check_branch
          %758 = sbr.rel (%p756) target = $region136
        $region135: #{tpu_custom_call.1} parent=87 // pred_region
          %v759 = vld [vmem:[%s654] sm:$0xff]
          %v760 = vld [vmem:[%s654 + $0x8] sm:$0xff]
          %vm761 = vcmask 261120
          %v762 = vsel %vm761, %v759, 0.0
          %763 = vadd.xlane.f32.xlu0 %v762
          %v764 = vpop.xlane.xlu0 %763
          %v765 = vsel %vm761, %v760, 0.0
          %766 = vadd.xlane.f32.xlu0 %v765
          %v767 = vpop.xlane.xlu0 %766
          %v768 = vrcp.pop 32.0
          %v769 = vmul.f32 %v764, %v768
          %v770 = vmul.f32 %v767, %v768
          %v771 = vsub.f32 %v759, %v769
          %v772 = vsub.f32 %v760, %v770
          %v773 = vmul.f32 %v771, %v771
          %v774 = vmul.f32 %v772, %v772
          %v775 = vsel %vm761, %v773, 0.0
          %776 = vadd.xlane.f32.xlu0 %v775
          %v777 = vpop.xlane.xlu0 %776
          %v778 = vsel %vm761, %v774, 0.0
          %779 = vadd.xlane.f32.xlu0 %v778
          %v780 = vpop.xlane.xlu0 %779
          %v781 = vmul.f32 %v777, %v768
          %v782 = vmul.f32 %v780, %v768
          %v783 = vadd.f32 %v781, 1e-05
          %v784 = vadd.f32 %v782, 1e-05
          %v785 = vrsqrt.pop %v783
          %v786 = vrsqrt.pop %v784
          %v787 = vmul.f32 %v771, %v785
          %v788 = vmul.f32 %v772, %v786
          %v789 = vld [vmem:[#allocation13] sm:$0x1]
          %v791 = vlaneseq
          %v792 = vshrl.u32 %v791, 7
          %v793 = vsub.s32 0, %v792
          %v794 = vrot.slane %v789, %v793
          %v796 = vmul.f32 %v787, %v794
          %v797 = vmul.f32 %v788, %v794
          %v798 = vld [vmem:[#allocation14] sm:$0x1]
          %v800 = vlaneseq
          %v801 = vshrl.u32 %v800, 7
          %v802 = vsub.s32 0, %v801
          %v803 = vrot.slane %v798, %v802
          %v805 = vadd.f32 %v796, %v803
          %v806 = vadd.f32 %v797, %v803
          %v807 = vpack.c.bf16 %v806, %v805
          %v808 = vld [vmem:[#allocation16] sm:$0x1]
          %v810 = vlaneseq
          %v811 = vshrl.u32 %v810, 7
          %v812 = vsub.s32 0, %v811
          %v813 = vrot.slane %v808, %v812
          %v815 = vmul.f32 %v787, %v813
          %v816 = vmul.f32 %v788, %v813
          %v817 = vld [vmem:[#allocation17] sm:$0x1]
          %v819 = vlaneseq
          %v820 = vshrl.u32 %v819, 7
          %v821 = vsub.s32 0, %v820
          %v822 = vrot.slane %v817, %v821
          %v824 = vadd.f32 %v815, %v822
          %v825 = vadd.f32 %v816, %v822
          %v826 = vpack.c.bf16 %v825, %v824
          %v827 = vld [vmem:[%s11] sm:$0xf]
          %v828 = vld [vmem:[%s11 + $0x4] sm:$0xf]
          %v829 = vld [vmem:[%s11 + $0x8] sm:$0xf]
          %v830 = vld [vmem:[%s11 + $0xc] sm:$0xf]
          %v831 = vld [vmem:[#allocation20] sm:$0x1]
          %v833 = vlaneseq
          %v834 = vshrl.u32 %v833, 7
          %v835 = vsub.s32 0, %v834
          %v836 = vrot.slane %v831, %v835
          %v842 = vunpack.c.l.b16 %v827
          %v843 = vunpack.c.l.b16 %v828
          %v844 = vunpack.c.l.b16 %v829
          %v845 = vunpack.c.l.b16 %v830
          %v846 = vpack.c.b16 %v843, %v842
          %v847 = vpack.c.b16 %v845, %v844
          %v851 = vsel %vm761, %v807, 0
          %853 = vmatprep.subr.bf16.mxu0 0
          %854 = vmatpush1.bf16.msra.mxu0 %v846
          %855 = vmatprep.subr.bf16.mxu0 0
          %856 = vmatpush1.bf16.msra.mxu0 %v847
          %857 = vmatprep.subr.bf16.mxu0 0
          %858 = vmatpush1.bf16.msra.mxu0 0
          %859 = vmatprep.subr.bf16.mxu0 0
          %860 = vmatpush1.bf16.msra.mxu0 0
          %861 = vmatprep.subr.bf16.mxu0 0
          %862 = vmatpush1.bf16.msra.mxu0 0
          %863 = vmatprep.subr.bf16.mxu0 0
          %864 = vmatpush1.bf16.msra.mxu0 0
          %865 = vmatprep.subr.bf16.mxu0 0
          %866 = vmatpush1.bf16.msra.mxu0 0
          %867 = vmatprep.subr.bf16.mxu0 0
          %868 = vmatpush1.bf16.msra.mxu0 0
          %869 = vmatprep.subr.bf16.mxu0 0
          %870 = vmatpush1.bf16.msra.mxu0 0
          %871 = vmatprep.subr.bf16.mxu0 0
          %872 = vmatpush1.bf16.msra.mxu0 0
          %873 = vmatprep.subr.bf16.mxu0 0
          %874 = vmatpush1.bf16.msra.mxu0 0
          %875 = vmatprep.subr.bf16.mxu0 0
          %876 = vmatpush1.bf16.msra.mxu0 0
          %877 = vmatprep.subr.bf16.mxu0 0
          %878 = vmatpush1.bf16.msra.mxu0 0
          %879 = vmatprep.subr.bf16.mxu0 0
          %880 = vmatpush1.bf16.msra.mxu0 0
          %881 = vmatprep.subr.bf16.mxu0 0
          %882 = vmatpush1.bf16.msra.mxu0 0
          %883 = vmatprep.subr.bf16.mxu0 0
          %884 = vmatpush1.bf16.msra.mxu0 0
          %885 = vmatprep.mubr.bf16.mxu0 0
          %886 = vmatmul.mubr.bf16.gmra.mrb[0].mxu0 %v851
          %v887 = vpop.f32.mrb[0].mxu0
          %v888 = vadd.f32 %v836, %v887
          %v889 = vpop.f32.mrb[0].mxu0
          %v890 = vpop.f32.mrb[0].mxu0
          %v891 = vadd.f32 %v836, %v890
          %v892 = vpop.f32.mrb[0].mxu0
          %893 = vdwg.mxu0
          %v894 = vld [vmem:[%s13] sm:$0xf]
          %v895 = vld [vmem:[%s13 + $0x4] sm:$0xf]
          %v896 = vld [vmem:[%s13 + $0x8] sm:$0xf]
          %v897 = vld [vmem:[%s13 + $0xc] sm:$0xf]
          %v898 = vld [vmem:[%s14] sm:$0x1]
          %v900 = vlaneseq
          %v901 = vshrl.u32 %v900, 7
          %v902 = vsub.s32 0, %v901
          %v903 = vrot.slane %v898, %v902
          %v909 = vunpack.c.l.b16 %v894
          %v910 = vunpack.c.l.b16 %v895
          %v911 = vunpack.c.l.b16 %v896
          %v912 = vunpack.c.l.b16 %v897
          %v913 = vpack.c.b16 %v910, %v909
          %v914 = vpack.c.b16 %v912, %v911
          %v918 = vsel %vm761, %v826, 0
          %920 = vmatprep.subr.bf16.mxu0 0
          %921 = vmatpush1.bf16.msra.mxu0 %v913
          %922 = vmatprep.subr.bf16.mxu0 0
          %923 = vmatpush1.bf16.msra.mxu0 %v914
          %924 = vmatprep.subr.bf16.mxu0 0
          %925 = vmatpush1.bf16.msra.mxu0 0
          %926 = vmatprep.subr.bf16.mxu0 0
          %927 = vmatpush1.bf16.msra.mxu0 0
          %928 = vmatprep.subr.bf16.mxu0 0
          %929 = vmatpush1.bf16.msra.mxu0 0
          %930 = vmatprep.subr.bf16.mxu0 0
          %931 = vmatpush1.bf16.msra.mxu0 0
          %932 = vmatprep.subr.bf16.mxu0 0
          %933 = vmatpush1.bf16.msra.mxu0 0
          %934 = vmatprep.subr.bf16.mxu0 0
          %935 = vmatpush1.bf16.msra.mxu0 0
          %936 = vmatprep.subr.bf16.mxu0 0
          %937 = vmatpush1.bf16.msra.mxu0 0
          %938 = vmatprep.subr.bf16.mxu0 0
          %939 = vmatpush1.bf16.msra.mxu0 0
          %940 = vmatprep.subr.bf16.mxu0 0
          %941 = vmatpush1.bf16.msra.mxu0 0
          %942 = vmatprep.subr.bf16.mxu0 0
          %943 = vmatpush1.bf16.msra.mxu0 0
          %944 = vmatprep.subr.bf16.mxu0 0
          %945 = vmatpush1.bf16.msra.mxu0 0
          %946 = vmatprep.subr.bf16.mxu0 0
          %947 = vmatpush1.bf16.msra.mxu0 0
          %948 = vmatprep.subr.bf16.mxu0 0
          %949 = vmatpush1.bf16.msra.mxu0 0
          %950 = vmatprep.subr.bf16.mxu0 0
          %951 = vmatpush1.bf16.msra.mxu0 0
          %952 = vmatprep.mubr.bf16.mxu0 0
          %953 = vmatmul.mubr.bf16.gmra.mrb[0].mxu0 %v918
          %v954 = vpop.f32.mrb[0].mxu0
          %v955 = vadd.f32 %v903, %v954
          %v956 = vpop.f32.mrb[0].mxu0
          %v957 = vpop.f32.mrb[0].mxu0
          %v958 = vadd.f32 %v903, %v957
          %v959 = vpop.f32.mrb[0].mxu0
          %960 = vdwg.mxu0
          %v961 = vpack.c.bf16 %v891, %v888
          %962 = vst.msk [vmem:[#allocation2] sm:$0xff] %vm761, %v961
          %v963 = vpack.c.bf16 %v958, %v955
          %964 = vst.msk [vmem:[#allocation3] sm:$0xff] %vm761, %v963
        $region136: #{tpu_custom_call.1} parent=87 // pred_fallthru
          _
        %v965 = vld [vmem:[%s645] sm:$0xff]
        %vm966 = vcmask 261120
        %v967 = vsel %vm966, %v965, 0.0
        %968 = vadd.xlane.f32.xlu0 %v967
        %v969 = vpop.xlane.xlu0 %968
        %v970 = vrcp.pop 32.0
        %v971 = vmul.f32 %v969, %v970
        %v972 = vsub.f32 %v965, %v971
        %v973 = vmul.f32 %v972, %v972
        %v974 = vsel %vm966, %v973, 0.0
        %975 = vadd.xlane.f32.xlu0 %v974
        %v976 = vpop.xlane.xlu0 %975
        %v977 = vmul.f32 %v976, %v970
        %v978 = vadd.f32 %v977, 1e-05
        %v979 = vrsqrt.pop %v978
        %v980 = vmul.f32 %v972, %v979
        %v981 = vld [vmem:[%s3] sm:$0x1]
        %v983 = vlaneseq
        %v984 = vshrl.u32 %v983, 7
        %v985 = vsub.s32 0, %v984
        %v986 = vrot.slane %v981, %v985
        %v988 = vmul.f32 %v980, %v986
        %v989 = vld [vmem:[#allocation11] sm:$0x1]
        %v991 = vlaneseq
        %v992 = vshrl.u32 %v991, 7
        %v993 = vsub.s32 0, %v992
        %v994 = vrot.slane %v989, %v993
        %v996 = vadd.f32 %v988, %v994
        %v997 = vpack.c.bf16 %v996, %v996
        %v998 = vld [vmem:[%s9] sm:$0xf]
        %v999 = vld [vmem:[%s9 + $0x4] sm:$0xf]
        %v1000 = vld [vmem:[%s9 + $0x8] sm:$0xf]
        %v1001 = vld [vmem:[%s9 + $0xc] sm:$0xf]
        %v1002 = vld [vmem:[#allocation19] sm:$0x1]
        %v1004 = vlaneseq
        %v1005 = vshrl.u32 %v1004, 7
        %v1006 = vsub.s32 0, %v1005
        %v1007 = vrot.slane %v1002, %v1006
        %v1013 = vunpack.c.l.b16 %v998
        %v1014 = vunpack.c.l.b16 %v999
        %v1015 = vunpack.c.l.b16 %v1000
        %v1016 = vunpack.c.l.b16 %v1001
        %v1017 = vpack.c.b16 %v1014, %v1013
        %v1018 = vpack.c.b16 %v1016, %v1015
        %v1022 = vsel %vm966, %v997, 0
        %1024 = vmatprep.subr.bf16.mxu0 0
        %1025 = vmatpush1.bf16.msra.mxu0 %v1017
        %1026 = vmatprep.subr.bf16.mxu0 0
        %1027 = vmatpush1.bf16.msra.mxu0 %v1018
        %1028 = vmatprep.subr.bf16.mxu0 0
        %1029 = vmatpush1.bf16.msra.mxu0 0
        %1030 = vmatprep.subr.bf16.mxu0 0
        %1031 = vmatpush1.bf16.msra.mxu0 0
        %1032 = vmatprep.subr.bf16.mxu0 0
        %1033 = vmatpush1.bf16.msra.mxu0 0
        %1034 = vmatprep.subr.bf16.mxu0 0
        %1035 = vmatpush1.bf16.msra.mxu0 0
        %1036 = vmatprep.subr.bf16.mxu0 0
        %1037 = vmatpush1.bf16.msra.mxu0 0
        %1038 = vmatprep.subr.bf16.mxu0 0
        %1039 = vmatpush1.bf16.msra.mxu0 0
        %1040 = vmatprep.subr.bf16.mxu0 0
        %1041 = vmatpush1.bf16.msra.mxu0 0
        %1042 = vmatprep.subr.bf16.mxu0 0
        %1043 = vmatpush1.bf16.msra.mxu0 0
        %1044 = vmatprep.subr.bf16.mxu0 0
        %1045 = vmatpush1.bf16.msra.mxu0 0
        %1046 = vmatprep.subr.bf16.mxu0 0
        %1047 = vmatpush1.bf16.msra.mxu0 0
        %1048 = vmatprep.subr.bf16.mxu0 0
        %1049 = vmatpush1.bf16.msra.mxu0 0
        %1050 = vmatprep.subr.bf16.mxu0 0
        %1051 = vmatpush1.bf16.msra.mxu0 0
        %1052 = vmatprep.subr.bf16.mxu0 0
        %1053 = vmatpush1.bf16.msra.mxu0 0
        %1054 = vmatprep.subr.bf16.mxu0 0
        %1055 = vmatpush1.bf16.msra.mxu0 0
        %1056 = vmatprep.mubr.bf16.mxu0 0
        %1057 = vmatmul.mubr.bf16.gmra.mrb[0].mxu0 %v1022
        %v1058 = vpop.f32.mrb[0].mxu0
        %v1059 = vadd.f32 %v1007, %v1058
        %v1060 = vpop.f32.mrb[0].mxu0
        %v1061 = vpop.f32.mrb[0].mxu0
        %v1062 = vpop.f32.mrb[0].mxu0
        %1063 = vdwg.mxu0
        %v1064 = vpack.c.bf16 %v1059, %v1059
        %v1065 = vld [vmem:[%s662] sm:$0x1]
        %v1066 = vld [vmem:[#allocation2] sm:$0xff]
        %v1067 = vld [vmem:[#allocation3] sm:$0xff]
        %v1069 = vlaneseq
        %v1070 = vshrl.u32 %v1069, 7
        %v1071 = vsub.s32 0, %v1070
        %v1072 = vrot.slane %v1065, %v1071
        %vm1074 = vcmask 64512
        %v1076 = vsel %vm1074, %v1064, 0
        %v1079 = vsel %vm1074, %v1066, 0
        %1081 = vmatprep.subr.bf16.mxu0 0
        %1082 = vmatpush1.bf16.xpose.msra.mxu0 %v1079
        %1083 = vmatprep.subr.bf16.mxu0 0
        %1084 = vmatpush1.bf16.xpose.msra.mxu0 0
        %1085 = vmatprep.subr.bf16.mxu0 0
        %1086 = vmatpush1.bf16.xpose.msra.mxu0 0
        %1087 = vmatprep.subr.bf16.mxu0 0
        %1088 = vmatpush1.bf16.xpose.msra.mxu0 0
        %1089 = vmatprep.subr.bf16.mxu0 0
        %1090 = vmatpush1.bf16.xpose.msra.mxu0 0
        %1091 = vmatprep.subr.bf16.mxu0 0
        %1092 = vmatpush1.bf16.xpose.msra.mxu0 0
        %1093 = vmatprep.subr.bf16.mxu0 0
        %1094 = vmatpush1.bf16.xpose.msra.mxu0 0
        %1095 = vmatprep.subr.bf16.mxu0 0
        %1096 = vmatpush1.bf16.xpose.msra.mxu0 0
        %1097 = vmatprep.subr.bf16.mxu0 0
        %1098 = vmatpush1.bf16.xpose.msra.mxu0 0
        %1099 = vmatprep.subr.bf16.mxu0 0
        %1100 = vmatpush1.bf16.xpose.msra.mxu0 0
        %1101 = vmatprep.subr.bf16.mxu0 0
        %1102 = vmatpush1.bf16.xpose.msra.mxu0 0
        %1103 = vmatprep.subr.bf16.mxu0 0
        %1104 = vmatpush1.bf16.xpose.msra.mxu0 0
        %1105 = vmatprep.subr.bf16.mxu0 0
        %1106 = vmatpush1.bf16.xpose.msra.mxu0 0
        %1107 = vmatprep.subr.bf16.mxu0 0
        %1108 = vmatpush1.bf16.xpose.msra.mxu0 0
        %1109 = vmatprep.subr.bf16.mxu0 0
        %1110 = vmatpush1.bf16.xpose.msra.mxu0 0
        %1111 = vmatprep.subr.bf16.mxu0 0
        %1112 = vmatpush1.bf16.xpose.msra.mxu0 0
        %1113 = vmatprep.mubr.bf16.mxu0 0
        %1114 = vmatmul.mubr.bf16.gmra.mrb[0].mxu0 %v1076
        %v1115 = vpop.f32.mrb[0].mxu0
        %v1116 = vadd.f32 %v1072, %v1115
        %v1117 = vpop.f32.mrb[0].mxu0
        %v1118 = vpop.f32.mrb[0].mxu0
        %v1119 = vpop.f32.mrb[0].mxu0
        %1120 = vdwg.mxu0
        %vm1121 = vcmask 130048
        %v1122 = vsel %vm1121, %v1116, -inf
        %1123 = vmax.xlane.f32.xlu0 %v1122
        %v1124 = vpop.xlane.xlu0 %1123
        %v1125 = vsub.f32 %v1116, %v1124
        %v1126 = vmul.f32 %v1125, 1.442695
        %v1127 = vpow.pop %v1126
        %v1128 = vsel %vm1121, %v1127, 0.0
        %1129 = vadd.xlane.f32.xlu0 %v1128
        %v1130 = vpop.xlane.xlu0 %1129
        %v1131 = vrcp.pop %v1130
        %v1132 = vpack.c.bf16 %v1127, %v1127
        %v1134 = vsel %vm1121, %v1132, 0
        %1136 = vmatprep.subr.bf16.mxu0 0
        %1137 = vmatpush1.bf16.msra.mxu0 %v1067
        %1138 = vmatprep.subr.bf16.mxu0 0
        %1139 = vmatpush1.bf16.msra.mxu0 0
        %1140 = vmatprep.subr.bf16.mxu0 0
        %1141 = vmatpush1.bf16.msra.mxu0 0
        %1142 = vmatprep.subr.bf16.mxu0 0
        %1143 = vmatpush1.bf16.msra.mxu0 0
        %1144 = vmatprep.subr.bf16.mxu0 0
        %1145 = vmatpush1.bf16.msra.mxu0 0
        %1146 = vmatprep.subr.bf16.mxu0 0
        %1147 = vmatpush1.bf16.msra.mxu0 0
        %1148 = vmatprep.subr.bf16.mxu0 0
        %1149 = vmatpush1.bf16.msra.mxu0 0
        %1150 = vmatprep.subr.bf16.mxu0 0
        %1151 = vmatpush1.bf16.msra.mxu0 0
        %1152 = vmatprep.subr.bf16.mxu0 0
        %1153 = vmatpush1.bf16.msra.mxu0 0
        %1154 = vmatprep.subr.bf16.mxu0 0
        %1155 = vmatpush1.bf16.msra.mxu0 0
        %1156 = vmatprep.subr.bf16.mxu0 0
        %1157 = vmatpush1.bf16.msra.mxu0 0
        %1158 = vmatprep.subr.bf16.mxu0 0
        %1159 = vmatpush1.bf16.msra.mxu0 0
        %1160 = vmatprep.subr.bf16.mxu0 0
        %1161 = vmatpush1.bf16.msra.mxu0 0
        %1162 = vmatprep.subr.bf16.mxu0 0
        %1163 = vmatpush1.bf16.msra.mxu0 0
        %1164 = vmatprep.subr.bf16.mxu0 0
        %1165 = vmatpush1.bf16.msra.mxu0 0
        %1166 = vmatprep.subr.bf16.mxu0 0
        %1167 = vmatpush1.bf16.msra.mxu0 0
        %1168 = vmatprep.mubr.bf16.mxu0 0
        %1169 = vmatmul.mubr.bf16.gmra.mrb[0].mxu0 %v1134
        %v1170 = vpop.f32.mrb[0].mxu0
        %v1171 = vadd.f32 0.0, %v1170
        %v1172 = vpop.f32.mrb[0].mxu0
        %v1173 = vpop.f32.mrb[0].mxu0
        %v1174 = vpop.f32.mrb[0].mxu0
        %1175 = vdwg.mxu0
        %v1176 = vmul.f32 %v1171, %v1131
        %1177 = vst.msk [vmem:[#allocation4] sm:$0xff] %vm1074, %v1176
        %1179 = vrot.lane.b32.xlu0 %v1064, 120
        %v1180 = vpop.permute.xlu0 %1179
        %1182 = vrot.lane.b32.xlu0 %v1066, 120
        %v1183 = vpop.permute.xlu0 %1182
        %v1185 = vsel %vm1074, %v1180, 0
        %v1188 = vsel %vm1074, %v1183, 0
        %1190 = vmatprep.subr.bf16.mxu0 0
        %1191 = vmatpush1.bf16.xpose.msra.mxu0 %v1188
        %1192 = vmatprep.subr.bf16.mxu0 0
        %1193 = vmatpush1.bf16.xpose.msra.mxu0 0
        %1194 = vmatprep.subr.bf16.mxu0 0
        %1195 = vmatpush1.bf16.xpose.msra.mxu0 0
        %1196 = vmatprep.subr.bf16.mxu0 0
        %1197 = vmatpush1.bf16.xpose.msra.mxu0 0
        %1198 = vmatprep.subr.bf16.mxu0 0
        %1199 = vmatpush1.bf16.xpose.msra.mxu0 0
        %1200 = vmatprep.subr.bf16.mxu0 0
        %1201 = vmatpush1.bf16.xpose.msra.mxu0 0
        %1202 = vmatprep.subr.bf16.mxu0 0
        %1203 = vmatpush1.bf16.xpose.msra.mxu0 0
        %1204 = vmatprep.subr.bf16.mxu0 0
        %1205 = vmatpush1.bf16.xpose.msra.mxu0 0
        %1206 = vmatprep.subr.bf16.mxu0 0
        %1207 = vmatpush1.bf16.xpose.msra.mxu0 0
        %1208 = vmatprep.subr.bf16.mxu0 0
        %1209 = vmatpush1.bf16.xpose.msra.mxu0 0
        %1210 = vmatprep.subr.bf16.mxu0 0
        %1211 = vmatpush1.bf16.xpose.msra.mxu0 0
        %1212 = vmatprep.subr.bf16.mxu0 0
        %1213 = vmatpush1.bf16.xpose.msra.mxu0 0
        %1214 = vmatprep.subr.bf16.mxu0 0
        %1215 = vmatpush1.bf16.xpose.msra.mxu0 0
        %1216 = vmatprep.subr.bf16.mxu0 0
        %1217 = vmatpush1.bf16.xpose.msra.mxu0 0
        %1218 = vmatprep.subr.bf16.mxu0 0
        %1219 = vmatpush1.bf16.xpose.msra.mxu0 0
        %1220 = vmatprep.subr.bf16.mxu0 0
        %1221 = vmatpush1.bf16.xpose.msra.mxu0 0
        %1222 = vmatprep.mubr.bf16.mxu0 0
        %1223 = vmatmul.mubr.bf16.gmra.mrb[0].mxu0 %v1185
        %v1224 = vpop.f32.mrb[0].mxu0
        %v1225 = vadd.f32 %v1072, %v1224
        %v1226 = vpop.f32.mrb[0].mxu0
        %v1227 = vpop.f32.mrb[0].mxu0
        %v1228 = vpop.f32.mrb[0].mxu0
        %1229 = vdwg.mxu0
        %v1230 = vsel %vm1121, %v1225, -inf
        %1231 = vmax.xlane.f32.xlu0 %v1230
        %v1232 = vpop.xlane.xlu0 %1231
        %v1233 = vsub.f32 %v1225, %v1232
        %v1234 = vmul.f32 %v1233, 1.442695
        %v1235 = vpow.pop %v1234
        %v1236 = vsel %vm1121, %v1235, 0.0
        %1237 = vadd.xlane.f32.xlu0 %v1236
        %v1238 = vpop.xlane.xlu0 %1237
        %v1239 = vrcp.pop %v1238
        %v1240 = vpack.c.bf16 %v1235, %v1235
        %1242 = vrot.lane.b32.xlu0 %v1067, 120
        %v1243 = vpop.permute.xlu0 %1242
        %v1246 = vsel %vm1121, %v1240, 0
        %1248 = vmatprep.subr.bf16.mxu0 0
        %1249 = vmatpush1.bf16.msra.mxu0 %v1243
        %1250 = vmatprep.subr.bf16.mxu0 0
        %1251 = vmatpush1.bf16.msra.mxu0 0
        %1252 = vmatprep.subr.bf16.mxu0 0
        %1253 = vmatpush1.bf16.msra.mxu0 0
        %1254 = vmatprep.subr.bf16.mxu0 0
        %1255 = vmatpush1.bf16.msra.mxu0 0
        %1256 = vmatprep.subr.bf16.mxu0 0
        %1257 = vmatpush1.bf16.msra.mxu0 0
        %1258 = vmatprep.subr.bf16.mxu0 0
        %1259 = vmatpush1.bf16.msra.mxu0 0
        %1260 = vmatprep.subr.bf16.mxu0 0
        %1261 = vmatpush1.bf16.msra.mxu0 0
        %1262 = vmatprep.subr.bf16.mxu0 0
        %1263 = vmatpush1.bf16.msra.mxu0 0
        %1264 = vmatprep.subr.bf16.mxu0 0
        %1265 = vmatpush1.bf16.msra.mxu0 0
        %1266 = vmatprep.subr.bf16.mxu0 0
        %1267 = vmatpush1.bf16.msra.mxu0 0
        %1268 = vmatprep.subr.bf16.mxu0 0
        %1269 = vmatpush1.bf16.msra.mxu0 0
        %1270 = vmatprep.subr.bf16.mxu0 0
        %1271 = vmatpush1.bf16.msra.mxu0 0
        %1272 = vmatprep.subr.bf16.mxu0 0
        %1273 = vmatpush1.bf16.msra.mxu0 0
        %1274 = vmatprep.subr.bf16.mxu0 0
        %1275 = vmatpush1.bf16.msra.mxu0 0
        %1276 = vmatprep.subr.bf16.mxu0 0
        %1277 = vmatpush1.bf16.msra.mxu0 0
        %1278 = vmatprep.subr.bf16.mxu0 0
        %1279 = vmatpush1.bf16.msra.mxu0 0
        %1280 = vmatprep.mubr.bf16.mxu0 0
        %1281 = vmatmul.mubr.bf16.gmra.mrb[0].mxu0 %v1246
        %v1282 = vpop.f32.mrb[0].mxu0
        %v1283 = vadd.f32 0.0, %v1282
        %v1284 = vpop.f32.mrb[0].mxu0
        %v1285 = vpop.f32.mrb[0].mxu0
        %v1286 = vpop.f32.mrb[0].mxu0
        %1287 = vdwg.mxu0
        %v1288 = vmul.f32 %v1283, %v1239
        %1290 = vrot.lane.b32.xlu0 %v1288, 8
        %v1291 = vpop.permute.xlu0 %1290
        %vm1293 = vcmask 130112
        %1294 = vst.msk [vmem:[#allocation4] sm:$0xff] %vm1293, %v1291
        %1295 = vrot.lane.b32.xlu0 %v1064, 112
        %v1296 = vpop.permute.xlu0 %1295
        %1297 = vrot.lane.b32.xlu0 %v1066, 112
        %v1298 = vpop.permute.xlu0 %1297
        %v1300 = vsel %vm1074, %v1296, 0
        %v1303 = vsel %vm1074, %v1298, 0
        %1305 = vmatprep.subr.bf16.mxu0 0
        %1306 = vmatpush1.bf16.xpose.msra.mxu0 %v1303
        %1307 = vmatprep.subr.bf16.mxu0 0
        %1308 = vmatpush1.bf16.xpose.msra.mxu0 0
        %1309 = vmatprep.subr.bf16.mxu0 0
        %1310 = vmatpush1.bf16.xpose.msra.mxu0 0
        %1311 = vmatprep.subr.bf16.mxu0 0
        %1312 = vmatpush1.bf16.xpose.msra.mxu0 0
        %1313 = vmatprep.subr.bf16.mxu0 0
        %1314 = vmatpush1.bf16.xpose.msra.mxu0 0
        %1315 = vmatprep.subr.bf16.mxu0 0
        %1316 = vmatpush1.bf16.xpose.msra.mxu0 0
        %1317 = vmatprep.subr.bf16.mxu0 0
        %1318 = vmatpush1.bf16.xpose.msra.mxu0 0
        %1319 = vmatprep.subr.bf16.mxu0 0
        %1320 = vmatpush1.bf16.xpose.msra.mxu0 0
        %1321 = vmatprep.subr.bf16.mxu0 0
        %1322 = vmatpush1.bf16.xpose.msra.mxu0 0
        %1323 = vmatprep.subr.bf16.mxu0 0
        %1324 = vmatpush1.bf16.xpose.msra.mxu0 0
        %1325 = vmatprep.subr.bf16.mxu0 0
        %1326 = vmatpush1.bf16.xpose.msra.mxu0 0
        %1327 = vmatprep.subr.bf16.mxu0 0
        %1328 = vmatpush1.bf16.xpose.msra.mxu0 0
        %1329 = vmatprep.subr.bf16.mxu0 0
        %1330 = vmatpush1.bf16.xpose.msra.mxu0 0
        %1331 = vmatprep.subr.bf16.mxu0 0
        %1332 = vmatpush1.bf16.xpose.msra.mxu0 0
        %1333 = vmatprep.subr.bf16.mxu0 0
        %1334 = vmatpush1.bf16.xpose.msra.mxu0 0
        %1335 = vmatprep.subr.bf16.mxu0 0
        %1336 = vmatpush1.bf16.xpose.msra.mxu0 0
        %1337 = vmatprep.mubr.bf16.mxu0 0
        %1338 = vmatmul.mubr.bf16.gmra.mrb[0].mxu0 %v1300
        %v1339 = vpop.f32.mrb[0].mxu0
        %v1340 = vadd.f32 %v1072, %v1339
        %v1341 = vpop.f32.mrb[0].mxu0
        %v1342 = vpop.f32.mrb[0].mxu0
        %v1343 = vpop.f32.mrb[0].mxu0
        %1344 = vdwg.mxu0
        %v1345 = vsel %vm1121, %v1340, -inf
        %1346 = vmax.xlane.f32.xlu0 %v1345
        %v1347 = vpop.xlane.xlu0 %1346
        %v1348 = vsub.f32 %v1340, %v1347
        %v1349 = vmul.f32 %v1348, 1.442695
        %v1350 = vpow.pop %v1349
        %v1351 = vsel %vm1121, %v1350, 0.0
        %1352 = vadd.xlane.f32.xlu0 %v1351
        %v1353 = vpop.xlane.xlu0 %1352
        %v1354 = vrcp.pop %v1353
        %v1355 = vpack.c.bf16 %v1350, %v1350
        %1356 = vrot.lane.b32.xlu0 %v1067, 112
        %v1357 = vpop.permute.xlu0 %1356
        %v1360 = vsel %vm1121, %v1355, 0
        %1362 = vmatprep.subr.bf16.mxu0 0
        %1363 = vmatpush1.bf16.msra.mxu0 %v1357
        %1364 = vmatprep.subr.bf16.mxu0 0
        %1365 = vmatpush1.bf16.msra.mxu0 0
        %1366 = vmatprep.subr.bf16.mxu0 0
        %1367 = vmatpush1.bf16.msra.mxu0 0
        %1368 = vmatprep.subr.bf16.mxu0 0
        %1369 = vmatpush1.bf16.msra.mxu0 0
        %1370 = vmatprep.subr.bf16.mxu0 0
        %1371 = vmatpush1.bf16.msra.mxu0 0
        %1372 = vmatprep.subr.bf16.mxu0 0
        %1373 = vmatpush1.bf16.msra.mxu0 0
        %1374 = vmatprep.subr.bf16.mxu0 0
        %1375 = vmatpush1.bf16.msra.mxu0 0
        %1376 = vmatprep.subr.bf16.mxu0 0
        %1377 = vmatpush1.bf16.msra.mxu0 0
        %1378 = vmatprep.subr.bf16.mxu0 0
        %1379 = vmatpush1.bf16.msra.mxu0 0
        %1380 = vmatprep.subr.bf16.mxu0 0
        %1381 = vmatpush1.bf16.msra.mxu0 0
        %1382 = vmatprep.subr.bf16.mxu0 0
        %1383 = vmatpush1.bf16.msra.mxu0 0
        %1384 = vmatprep.subr.bf16.mxu0 0
        %1385 = vmatpush1.bf16.msra.mxu0 0
        %1386 = vmatprep.subr.bf16.mxu0 0
        %1387 = vmatpush1.bf16.msra.mxu0 0
        %1388 = vmatprep.subr.bf16.mxu0 0
        %1389 = vmatpush1.bf16.msra.mxu0 0
        %1390 = vmatprep.subr.bf16.mxu0 0
        %1391 = vmatpush1.bf16.msra.mxu0 0
        %1392 = vmatprep.subr.bf16.mxu0 0
        %1393 = vmatpush1.bf16.msra.mxu0 0
        %1394 = vmatprep.mubr.bf16.mxu0 0
        %1395 = vmatmul.mubr.bf16.gmra.mrb[0].mxu0 %v1360
        %v1396 = vpop.f32.mrb[0].mxu0
        %v1397 = vadd.f32 0.0, %v1396
        %v1398 = vpop.f32.mrb[0].mxu0
        %v1399 = vpop.f32.mrb[0].mxu0
        %v1400 = vpop.f32.mrb[0].mxu0
        %1401 = vdwg.mxu0
        %v1402 = vmul.f32 %v1397, %v1354
        %1404 = vrot.lane.b32.xlu0 %v1402, 16
        %v1405 = vpop.permute.xlu0 %1404
        %vm1407 = vcmask 195712
        %1408 = vst.msk [vmem:[#allocation4] sm:$0xff] %vm1407, %v1405
        %1409 = vrot.lane.b32.xlu0 %v1064, 104
        %v1410 = vpop.permute.xlu0 %1409
        %1411 = vrot.lane.b32.xlu0 %v1066, 104
        %v1412 = vpop.permute.xlu0 %1411
        %v1414 = vsel %vm1074, %v1410, 0
        %v1417 = vsel %vm1074, %v1412, 0
        %1419 = vmatprep.subr.bf16.mxu0 0
        %1420 = vmatpush1.bf16.xpose.msra.mxu0 %v1417
        %1421 = vmatprep.subr.bf16.mxu0 0
        %1422 = vmatpush1.bf16.xpose.msra.mxu0 0
        %1423 = vmatprep.subr.bf16.mxu0 0
        %1424 = vmatpush1.bf16.xpose.msra.mxu0 0
        %1425 = vmatprep.subr.bf16.mxu0 0
        %1426 = vmatpush1.bf16.xpose.msra.mxu0 0
        %1427 = vmatprep.subr.bf16.mxu0 0
        %1428 = vmatpush1.bf16.xpose.msra.mxu0 0
        %1429 = vmatprep.subr.bf16.mxu0 0
        %1430 = vmatpush1.bf16.xpose.msra.mxu0 0
        %1431 = vmatprep.subr.bf16.mxu0 0
        %1432 = vmatpush1.bf16.xpose.msra.mxu0 0
        %1433 = vmatprep.subr.bf16.mxu0 0
        %1434 = vmatpush1.bf16.xpose.msra.mxu0 0
        %1435 = vmatprep.subr.bf16.mxu0 0
        %1436 = vmatpush1.bf16.xpose.msra.mxu0 0
        %1437 = vmatprep.subr.bf16.mxu0 0
        %1438 = vmatpush1.bf16.xpose.msra.mxu0 0
        %1439 = vmatprep.subr.bf16.mxu0 0
        %1440 = vmatpush1.bf16.xpose.msra.mxu0 0
        %1441 = vmatprep.subr.bf16.mxu0 0
        %1442 = vmatpush1.bf16.xpose.msra.mxu0 0
        %1443 = vmatprep.subr.bf16.mxu0 0
        %1444 = vmatpush1.bf16.xpose.msra.mxu0 0
        %1445 = vmatprep.subr.bf16.mxu0 0
        %1446 = vmatpush1.bf16.xpose.msra.mxu0 0
        %1447 = vmatprep.subr.bf16.mxu0 0
        %1448 = vmatpush1.bf16.xpose.msra.mxu0 0
        %1449 = vmatprep.subr.bf16.mxu0 0
        %1450 = vmatpush1.bf16.xpose.msra.mxu0 0
        %1451 = vmatprep.mubr.bf16.mxu0 0
        %1452 = vmatmul.mubr.bf16.gmra.mrb[0].mxu0 %v1414
        %v1453 = vpop.f32.mrb[0].mxu0
        %v1454 = vadd.f32 %v1072, %v1453
        %v1455 = vpop.f32.mrb[0].mxu0
        %v1456 = vpop.f32.mrb[0].mxu0
        %v1457 = vpop.f32.mrb[0].mxu0
        %1458 = vdwg.mxu0
        %v1459 = vsel %vm1121, %v1454, -inf
        %1460 = vmax.xlane.f32.xlu0 %v1459
        %v1461 = vpop.xlane.xlu0 %1460
        %v1462 = vsub.f32 %v1454, %v1461
        %v1463 = vmul.f32 %v1462, 1.442695
        %v1464 = vpow.pop %v1463
        %v1465 = vsel %vm1121, %v1464, 0.0
        %1466 = vadd.xlane.f32.xlu0 %v1465
        %v1467 = vpop.xlane.xlu0 %1466
        %v1468 = vrcp.pop %v1467
        %v1469 = vpack.c.bf16 %v1464, %v1464
        %1470 = vrot.lane.b32.xlu0 %v1067, 104
        %v1471 = vpop.permute.xlu0 %1470
        %v1474 = vsel %vm1121, %v1469, 0
        %1476 = vmatprep.subr.bf16.mxu0 0
        %1477 = vmatpush1.bf16.msra.mxu0 %v1471
        %1478 = vmatprep.subr.bf16.mxu0 0
        %1479 = vmatpush1.bf16.msra.mxu0 0
        %1480 = vmatprep.subr.bf16.mxu0 0
        %1481 = vmatpush1.bf16.msra.mxu0 0
        %1482 = vmatprep.subr.bf16.mxu0 0
        %1483 = vmatpush1.bf16.msra.mxu0 0
        %1484 = vmatprep.subr.bf16.mxu0 0
        %1485 = vmatpush1.bf16.msra.mxu0 0
        %1486 = vmatprep.subr.bf16.mxu0 0
        %1487 = vmatpush1.bf16.msra.mxu0 0
        %1488 = vmatprep.subr.bf16.mxu0 0
        %1489 = vmatpush1.bf16.msra.mxu0 0
        %1490 = vmatprep.subr.bf16.mxu0 0
        %1491 = vmatpush1.bf16.msra.mxu0 0
        %1492 = vmatprep.subr.bf16.mxu0 0
        %1493 = vmatpush1.bf16.msra.mxu0 0
        %1494 = vmatprep.subr.bf16.mxu0 0
        %1495 = vmatpush1.bf16.msra.mxu0 0
        %1496 = vmatprep.subr.bf16.mxu0 0
        %1497 = vmatpush1.bf16.msra.mxu0 0
        %1498 = vmatprep.subr.bf16.mxu0 0
        %1499 = vmatpush1.bf16.msra.mxu0 0
        %1500 = vmatprep.subr.bf16.mxu0 0
        %1501 = vmatpush1.bf16.msra.mxu0 0
        %1502 = vmatprep.subr.bf16.mxu0 0
        %1503 = vmatpush1.bf16.msra.mxu0 0
        %1504 = vmatprep.subr.bf16.mxu0 0
        %1505 = vmatpush1.bf16.msra.mxu0 0
        %1506 = vmatprep.subr.bf16.mxu0 0
        %1507 = vmatpush1.bf16.msra.mxu0 0
        %1508 = vmatprep.mubr.bf16.mxu0 0
        %1509 = vmatmul.mubr.bf16.gmra.mrb[0].mxu0 %v1474
        %v1510 = vpop.f32.mrb[0].mxu0
        %v1511 = vadd.f32 0.0, %v1510
        %v1512 = vpop.f32.mrb[0].mxu0
        %v1513 = vpop.f32.mrb[0].mxu0
        %v1514 = vpop.f32.mrb[0].mxu0
        %1515 = vdwg.mxu0
        %v1516 = vmul.f32 %v1511, %v1468
        %1518 = vrot.lane.b32.xlu0 %v1516, 24
        %v1519 = vpop.permute.xlu0 %1518
        %vm1521 = vcmask 261312
        %1522 = vst.msk [vmem:[#allocation4] sm:$0xff] %vm1521, %v1519
        %v1523 = vld [vmem:[#allocation4] sm:$0xff]
        %v1524 = vpack.c.bf16 %v1523, %v1523
        %v1525 = vld [vmem:[#allocation22] sm:$0xf]
        %v1526 = vld [vmem:[#allocation22 + $0x4] sm:$0xf]
        %v1527 = vld [vmem:[#allocation22 + $0x8] sm:$0xf]
        %v1528 = vld [vmem:[#allocation22 + $0xc] sm:$0xf]
        %v1529 = vld [vmem:[%s16] sm:$0x1]
        %v1531 = vlaneseq
        %v1532 = vshrl.u32 %v1531, 7
        %v1533 = vsub.s32 0, %v1532
        %v1534 = vrot.slane %v1529, %v1533
        %v1540 = vunpack.c.l.b16 %v1525
        %v1541 = vunpack.c.l.b16 %v1526
        %v1542 = vunpack.c.l.b16 %v1527
        %v1543 = vunpack.c.l.b16 %v1528
        %v1544 = vpack.c.b16 %v1541, %v1540
        %v1545 = vpack.c.b16 %v1543, %v1542
        %v1549 = vsel %vm966, %v1524, 0
        %1551 = vmatprep.subr.bf16.mxu0 0
        %1552 = vmatpush1.bf16.msra.mxu0 %v1544
        %1553 = vmatprep.subr.bf16.mxu0 0
        %1554 = vmatpush1.bf16.msra.mxu0 %v1545
        %1555 = vmatprep.subr.bf16.mxu0 0
        %1556 = vmatpush1.bf16.msra.mxu0 0
        %1557 = vmatprep.subr.bf16.mxu0 0
        %1558 = vmatpush1.bf16.msra.mxu0 0
        %1559 = vmatprep.subr.bf16.mxu0 0
        %1560 = vmatpush1.bf16.msra.mxu0 0
        %1561 = vmatprep.subr.bf16.mxu0 0
        %1562 = vmatpush1.bf16.msra.mxu0 0
        %1563 = vmatprep.subr.bf16.mxu0 0
        %1564 = vmatpush1.bf16.msra.mxu0 0
        %1565 = vmatprep.subr.bf16.mxu0 0
        %1566 = vmatpush1.bf16.msra.mxu0 0
        %1567 = vmatprep.subr.bf16.mxu0 0
        %1568 = vmatpush1.bf16.msra.mxu0 0
        %1569 = vmatprep.subr.bf16.mxu0 0
        %1570 = vmatpush1.bf16.msra.mxu0 0
        %1571 = vmatprep.subr.bf16.mxu0 0
        %1572 = vmatpush1.bf16.msra.mxu0 0
        %1573 = vmatprep.subr.bf16.mxu0 0
        %1574 = vmatpush1.bf16.msra.mxu0 0
        %1575 = vmatprep.subr.bf16.mxu0 0
        %1576 = vmatpush1.bf16.msra.mxu0 0
        %1577 = vmatprep.subr.bf16.mxu0 0
        %1578 = vmatpush1.bf16.msra.mxu0 0
        %1579 = vmatprep.subr.bf16.mxu0 0
        %1580 = vmatpush1.bf16.msra.mxu0 0
        %1581 = vmatprep.subr.bf16.mxu0 0
        %1582 = vmatpush1.bf16.msra.mxu0 0
        %1583 = vmatprep.mubr.bf16.mxu0 0
        %1584 = vmatmul.mubr.bf16.gmra.mrb[0].mxu0 %v1549
        %v1585 = vpop.f32.mrb[0].mxu0
        %v1586 = vadd.f32 %v1534, %v1585
        %v1587 = vpop.f32.mrb[0].mxu0
        %v1588 = vpop.f32.mrb[0].mxu0
        %v1589 = vpop.f32.mrb[0].mxu0
        %1590 = vdwg.mxu0
        %v1591 = vadd.f32 %v1586, %v965
        %1592 = vst.msk [vmem:[%s753] sm:$0xff] %vm966, %v1591
        %s1593 = sand.u32 %s437, 1
        %s1594 = scalar_lea.sflag [#allocation7], %s1593
        %s1595 = sand.u32 %s437, 1
        %s1596 = smul.addr %s1595, 8
        %s1597 = scalar_lea.vmem [#allocation23], %s1596
        // Predicated region
        $region137: #{tpu_custom_call.1} parent=87 // pred_check
          %p1598 = pneg %p447
        $region138: #{tpu_custom_call.1} parent=87 // pred_check_branch
          %1600 = sbr.rel (%p1598) target = $region140
        $region139: #{tpu_custom_call.1} parent=87 // pred_region
          %s1602 = ssub.s32 128, 128
          %1603 = vsyncadd %s1594, %s1602
          %s1604 = sadd.s32 %s46, %s45
          %s1605 = smul.addr %s1604, 128
          %s1606 = scalar_lea.hbm %s17, %s1605
          %s1608 = sshll.u32 %s1597, 4
          %s1609 = int_to_ptr.vmem [resolvable:$true] %s1608
          %1611 = dma.vmem_to_hbm [thread:$0]  %s1609, 128, %s1606, %s1594
        $region140: #{tpu_custom_call.1} parent=87 // pred_fallthru
          _
      $region88: #{tpu_custom_call.1} parent=5 // pred_fallthru
        _
      %p1612 = scmp.le.s32.totalorder 2, %s36
      // Predicated region
      $region141: #{tpu_custom_call.1} parent=5 // pred_check
        %p1613 = pneg %p1612
      $region142: #{tpu_custom_call.1} parent=5 // pred_check_branch
        %1615 = sbr.rel (%p1613) target = $region144
      $region143: #{tpu_custom_call.1} parent=5 // pred_region
        %s1616 = ssub.s32 %s36, 2
        // Predicated region
        $region145: #{tpu_custom_call.1} parent=143 // pred_check
          %p1617 = pneg %p453
        $region146: #{tpu_custom_call.1} parent=143 // pred_check_branch
          %1619 = sbr.rel (%p1617) target = $region148
        $region147: #{tpu_custom_call.1} parent=143 // pred_region
          %s1620 = sand.u32 %s438, 1
          %s1621 = scalar_lea.sflag [#allocation7], %s1620
          %s1622 = sand.u32 %s438, 1
          %s1623 = smul.addr %s1622, 8
          %s1624 = scalar_lea.vmem [#allocation23], %s1623
          %1625 = dma.done %s1621, 128
        $region148: #{tpu_custom_call.1} parent=143 // pred_fallthru
          _
      $region144: #{tpu_custom_call.1} parent=5 // pred_fallthru
        _
    $region6: #{tpu_custom_call.1} parent=1 // loop_footer
      %s40 = sadd.s32 1, %s36
    $region7: #{tpu_custom_call.1} parent=1 // loop_footer_branch
      %35 = sbr.rel target = $region3
    $region8: #{tpu_custom_call.1} parent=1 // loop_exit
      _
    %1626 = vsyncpa [#allocation6], 1
    %s1627 = scalar_lea.sflag [#allocation6], 1
    %1628 = vsyncpa %s1627, 1
    %1629 = vsyncpa [#allocation9], 1
    %s1630 = scalar_lea.sflag [#allocation9], 1
    %1631 = vsyncpa %s1630, 1
    %1632 = vsyncpa [#allocation12], 1
    %1633 = vsyncpa [#allocation15], 1
    %1634 = vsyncpa [#allocation18], 1
    %1635 = vsyncpa [#allocation21], 1
    %1636 = vsyncpa [#allocation7], 1
    %s1637 = scalar_lea.sflag [#allocation7], 1
    %1638 = vsyncpa %s1637, 1

</llo_original>
